<compile_context>
chip_gen: v5e
topology: v5e:2x2
jax: 0.10.0
libtpu: 0.0.40
codegen_flags: <defaults>
</compile_context>

<pallas_src>
import functools

import numpy as np
import jax
import jax.numpy as jnp
from jax import lax
from jax.experimental import pallas as pl
from jax.experimental.pallas import tpu as pltpu


def _conv2d_as_dense(w, b, in_hw, stride, padding):
    """Dense 'unrolled convolution' matrix for Conv2d on NCHW-flattened input.

    Row index  = c_in * H * W + h * W + w          (torch .view(N, -1) order)
    Col index  = c_out * OH * OW + oh * OW + ow
    Entry      = weight[c_out, c_in, kh, kw] where (h, w) is the input tap of
                 output (oh, ow); 0 elsewhere (zero padding handled implicitly).
    """
    O, C, KH, KW = w.shape
    H, W = in_hw
    OH = (H + 2 * padding - KH) // stride + 1
    OW = (W + 2 * padding - KW) // stride + 1
    wn = np.asarray(w, np.float32)
    dense = np.zeros((C * H * W, O * OH * OW), np.float32)
    c_rows = np.arange(C) * (H * W)
    o_cols = np.arange(O) * (OH * OW)
    for oh in range(OH):
        for ow in range(OW):
            cols = o_cols + oh * OW + ow                          # (O,)
            for kh in range(KH):
                h = oh * stride + kh - padding
                if not 0 <= h < H:
                    continue
                for kw in range(KW):
                    wp = ow * stride + kw - padding
                    if not 0 <= wp < W:
                        continue
                    rows = c_rows + h * W + wp                    # (C,)
                    dense[np.ix_(rows, cols)] = wn[:, :, kh, kw].T  # (C, O)
    bias = np.repeat(np.asarray(b, np.float32), OH * OW)          # (O*OH*OW,)
    return dense, bias, (OH, OW)


def _make_encoder_kernel(acts_dtype):
    """Whole encoder: alternating (matmul, bias, ReLU) layers, last layer
    (the fused fc_mu/fc_log_var head) has no ReLU.  Everything stays in VMEM;
    the only vector work besides MXU pushes is the bias add + ReLU."""

    def kernel(*refs):
        x_ref, out_ref = refs[0], refs[-1]
        wb_refs = refs[1:-1]                       # alternating (W, b) pairs
        n_layers = len(wb_refs) // 2
        h = x_ref[...].astype(acts_dtype)
        for li in range(n_layers):
            w_ref = wb_refs[2 * li]
            b_ref = wb_refs[2 * li + 1]
            h = jnp.dot(h, w_ref[...], preferred_element_type=jnp.float32)
            h = h + b_ref[...]
            if li < n_layers - 1:                  # conv layers: ReLU
                h = jnp.maximum(h, 0.0).astype(acts_dtype)
        out_ref[...] = h                           # (bm, 2*latent), f32

    return kernel


def _encoder_forward(params, x, *, acts_dtype):
    """Wrapper: one reshape + one pallas_call (no im2col / layout churn)."""
    N = x.shape[0]
    xf = x.reshape(N, -1)                          # NCHW flatten, matches torch
    K0 = xf.shape[1]
    L2 = params[-1].shape[1]                       # 2 * latent_dimension

    # Batch tile: full batch at demo size; 128-row tiles (sharded across the
    # v7x TensorCores via the "parallel" axis) once the batch grows.
    bm = N if N <= 128 else 128
    grid = (pl.cdiv(N, bm),)

    in_specs = [pl.BlockSpec((bm, K0), lambda i: (i, 0))]         # batch tile
    in_specs += [pl.BlockSpec(p.shape, lambda i: (0, 0)) for p in params]

    out = pl.pallas_call(
        _make_encoder_kernel(acts_dtype),
        out_shape=jax.ShapeDtypeStruct((N, L2), jnp.float32),
        grid=grid,
        in_specs=in_specs,
        out_specs=pl.BlockSpec((bm, L2), lambda i: (i, 0)),
        compiler_params=pltpu.CompilerParams(
            dimension_semantics=("parallel",)),
    )(xf, *params)

    L = L2 // 2
    return out[:, :L], out[:, L:]


class EncoderPallas:
    """Pallas/TPU port of models/vae.py::Encoder (forward pass only)."""

    def __init__(self, input_dimension, encoder_conv_layers, latent_dimension,
                 key, matmul_dtype=jnp.float32):
        # matmul_dtype=jnp.bfloat16 enables the MXU-native path recommended for
        # v6e/v7x (f32 accumulation kept); default f32 matches PyTorch exactly.

        # ----- parameters in PyTorch layouts with PyTorch-default init -----
        self.conv_params = []   # [(weight (O,C,k,k), bias (O,)), ...]
        self.conv_cfg = []      # [(kernel, stride, padding), ...]
        in_ch = input_dimension[0]
        dims = [(input_dimension[1], input_dimension[2])]
        for out_ch, ksize, stride, padding in encoder_conv_layers:
            key, kwk, kbk = jax.random.split(key, 3)
            fan_in = in_ch * ksize * ksize
            bound = 1.0 / float(fan_in) ** 0.5
            wgt = jax.random.uniform(kwk, (out_ch, in_ch, ksize, ksize),
                                     jnp.float32, -bound, bound)
            b = jax.random.uniform(kbk, (out_ch,), jnp.float32, -bound, bound)
            self.conv_params.append((wgt, b))
            self.conv_cfg.append((ksize, stride, padding))
            H_prev, W_prev = dims[-1]
            dims.append(((H_prev + 2 * padding - ksize) // stride + 1,
                         (W_prev + 2 * padding - ksize) // stride + 1))
            in_ch = out_ch

        H_out, W_out = dims[-1]
        flattened = in_ch * H_out * W_out
        self.flattened_size = flattened
        self.latent_dimension = latent_dimension

        key, ka, kb, kc, kd = jax.random.split(key, 5)
        bound = 1.0 / float(flattened) ** 0.5
        self.fc_mu_w = jax.random.uniform(
            ka, (latent_dimension, flattened), jnp.float32, -bound, bound)
        self.fc_mu_b = jax.random.uniform(
            kb, (latent_dimension,), jnp.float32, -bound, bound)
        self.fc_lv_w = jax.random.uniform(
            kc, (latent_dimension, flattened), jnp.float32, -bound, bound)
        self.fc_lv_b = jax.random.uniform(
            kd, (latent_dimension,), jnp.float32, -bound, bound)

        # -------- one-time repack: unrolled-conv matrices + fused FC --------
        hw = dims[0]
        params = []
        for (w, b), (ksize, stride, padding) in zip(self.conv_params,
                                                    self.conv_cfg):
            dense_w, dense_b, hw = _conv2d_as_dense(w, b, hw, stride, padding)
            params.append(jnp.asarray(dense_w, dtype=matmul_dtype))
            params.append(jnp.asarray(dense_b.reshape(1, -1), jnp.float32))
        # Hidden flatten order already equals torch's NCHW .view(N, -1), so the
        # fused fc_mu/fc_log_var weight needs no permutation.
        wfc = np.concatenate([np.asarray(self.fc_mu_w, np.float32),
                              np.asarray(self.fc_lv_w, np.float32)], axis=0).T
        bfc = np.concatenate([np.asarray(self.fc_mu_b, np.float32),
                              np.asarray(self.fc_lv_b, np.float32)])
        params.append(jnp.asarray(wfc, dtype=matmul_dtype))
        params.append(jnp.asarray(bfc.reshape(1, -1), jnp.float32))
        self._params = tuple(params)

        self._fwd = jax.jit(
            functools.partial(_encoder_forward, acts_dtype=matmul_dtype))

    def __call__(self, x):
        return self._fwd(self._params, x)

    # Pure-JAX (XLA) reference of the same forward pass, for verification.
    def reference_forward(self, x):
        y = x
        for (w, b), (k, s, p) in zip(self.conv_params, self.conv_cfg):
            y = lax.conv_general_dilated(
                y, w, window_strides=(s, s), padding=[(p, p), (p, p)],
                dimension_numbers=("NCHW", "OIHW", "NCHW"))
            y = jnp.maximum(y + b[None, :, None, None], 0.0)
        yf = y.reshape(y.shape[0], -1)
        mu = yf @ self.fc_mu_w.T + self.fc_mu_b
        lv = yf @ self.fc_lv_w.T + self.fc_lv_b
        return mu, lv


if __name__ == "__main__":
    key = jax.random.PRNGKey(0)
    key, xkey, pkey = jax.random.split(key, 3)

    input_dimension = [4, 16, 16]   # [C, H, W]
    encoder_conv_layers = [
        (8, 3, 2, 1),               # (out_channels, kernel, stride, padding)
        (16, 3, 2, 1),
    ]
    latent_dimension = 32
    batch = 2

    x = jax.random.normal(xkey, (batch, *input_dimension), jnp.float32)

    # ---------------- default f32 path (exact PyTorch semantics) -----------
    enc = EncoderPallas(input_dimension, encoder_conv_layers,
                        latent_dimension, pkey)
    mu, log_var = enc(x)
    jax.block_until_ready((mu, log_var))

    assert mu.shape == (batch, latent_dimension)
    assert log_var.shape == (batch, latent_dimension)
    assert mu.dtype == jnp.float32 and log_var.dtype == jnp.float32

    mu_ref, lv_ref = enc.reference_forward(x)
    assert bool(jnp.allclose(mu, mu_ref, atol=2e-4, rtol=2e-4))
    assert bool(jnp.allclose(log_var, lv_ref, atol=2e-4, rtol=2e-4))

    # -------- bf16 MXU-native variant (v6e/v7x perf feedback) --------------
    enc_bf16 = EncoderPallas(input_dimension, encoder_conv_layers,
                             latent_dimension, pkey,
                             matmul_dtype=jnp.bfloat16)
    mu_b, lv_b = enc_bf16(x)
    jax.block_until_ready((mu_b, lv_b))
    assert bool(jnp.allclose(mu_b, mu_ref, atol=5e-2, rtol=5e-2))
    assert bool(jnp.allclose(lv_b, lv_ref, atol=5e-2, rtol=5e-2))

    print("KERNEL_OK")
</pallas_src>

<mosaic_0001>
module attributes {stable_mosaic.version = 11 : i64} {
  func.func @kernel(%arg0: i32, %arg1: memref<2x1024xf32, #tpu.memory_space<vmem>>, %arg2: memref<1024x512xf32, #tpu.memory_space<vmem>>, %arg3: memref<1x512xf32, #tpu.memory_space<vmem>>, %arg4: memref<512x256xf32, #tpu.memory_space<vmem>>, %arg5: memref<1x256xf32, #tpu.memory_space<vmem>>, %arg6: memref<256x64xf32, #tpu.memory_space<vmem>>, %arg7: memref<1x64xf32, #tpu.memory_space<vmem>>, %arg8: memref<2x64xf32, #tpu.memory_space<vmem>>) attributes {dimension_semantics = [#tpu.dimension_semantics<parallel>], iteration_bounds = array<i64: 1>, scalar_prefetch = 0 : i64, scratch_operands = 0 : i64, tpu.core_type = #tpu.core_type<tc>, window_params = [{transform_indices = @transform_0, window_bounds = array<i64: 2, 1024>}, {pipeline_mode = #tpu.pipeline_mode<synchronous>, transform_indices = @transform_1, window_bounds = array<i64: 1024, 512>}, {pipeline_mode = #tpu.pipeline_mode<synchronous>, transform_indices = @transform_2, window_bounds = array<i64: 1, 512>}, {pipeline_mode = #tpu.pipeline_mode<synchronous>, transform_indices = @transform_3, window_bounds = array<i64: 512, 256>}, {pipeline_mode = #tpu.pipeline_mode<synchronous>, transform_indices = @transform_4, window_bounds = array<i64: 1, 256>}, {pipeline_mode = #tpu.pipeline_mode<synchronous>, transform_indices = @transform_5, window_bounds = array<i64: 256, 64>}, {pipeline_mode = #tpu.pipeline_mode<synchronous>, transform_indices = @transform_6, window_bounds = array<i64: 1, 64>}, {transform_indices = @transform_7, window_bounds = array<i64: 2, 64>}]} {
    %c0 = arith.constant 0 : index
    %c0_0 = arith.constant 0 : index
    %0 = vector.load %arg1[%c0, %c0_0] : memref<2x1024xf32, #tpu.memory_space<vmem>>, vector<2x1024xf32>
    %c0_1 = arith.constant 0 : index
    %c0_2 = arith.constant 0 : index
    %1 = vector.load %arg2[%c0_1, %c0_2] : memref<1024x512xf32, #tpu.memory_space<vmem>>, vector<1024x512xf32>
    %cst = arith.constant dense<0.000000e+00> : vector<2x512xf32>
    %2 = tpu.matmul %0, %1, %cst {dimension_numbers = #tpu.dot_dimension_numbers<[1], [0], [0], [1], [0, 0, 1, 1], [], []>} : vector<2x1024xf32>, vector<1024x512xf32>, vector<2x512xf32> -> vector<2x512xf32>
    %c0_3 = arith.constant 0 : index
    %c0_4 = arith.constant 0 : index
    %3 = vector.load %arg3[%c0_3, %c0_4] : memref<1x512xf32, #tpu.memory_space<vmem>>, vector<1x512xf32>
    %4 = vector.broadcast %3 : vector<1x512xf32> to vector<2x512xf32>
    %5 = arith.addf %2, %4 : vector<2x512xf32>
    %cst_5 = arith.constant 0.000000e+00 : f32
    %6 = vector.broadcast %cst_5 : f32 to vector<2x512xf32>
    %7 = arith.maximumf %5, %6 : vector<2x512xf32>
    %c0_6 = arith.constant 0 : index
    %c0_7 = arith.constant 0 : index
    %8 = vector.load %arg4[%c0_6, %c0_7] : memref<512x256xf32, #tpu.memory_space<vmem>>, vector<512x256xf32>
    %cst_8 = arith.constant dense<0.000000e+00> : vector<2x256xf32>
    %9 = tpu.matmul %7, %8, %cst_8 {dimension_numbers = #tpu.dot_dimension_numbers<[1], [0], [0], [1], [0, 0, 1, 1], [], []>} : vector<2x512xf32>, vector<512x256xf32>, vector<2x256xf32> -> vector<2x256xf32>
    %c0_9 = arith.constant 0 : index
    %c0_10 = arith.constant 0 : index
    %10 = vector.load %arg5[%c0_9, %c0_10] : memref<1x256xf32, #tpu.memory_space<vmem>>, vector<1x256xf32>
    %11 = vector.broadcast %10 : vector<1x256xf32> to vector<2x256xf32>
    %12 = arith.addf %9, %11 : vector<2x256xf32>
    %cst_11 = arith.constant 0.000000e+00 : f32
    %13 = vector.broadcast %cst_11 : f32 to vector<2x256xf32>
    %14 = arith.maximumf %12, %13 : vector<2x256xf32>
    %c0_12 = arith.constant 0 : index
    %c0_13 = arith.constant 0 : index
    %15 = vector.load %arg6[%c0_12, %c0_13] : memref<256x64xf32, #tpu.memory_space<vmem>>, vector<256x64xf32>
    %cst_14 = arith.constant dense<0.000000e+00> : vector<2x64xf32>
    %16 = tpu.matmul %14, %15, %cst_14 {dimension_numbers = #tpu.dot_dimension_numbers<[1], [0], [0], [1], [0, 0, 1, 1], [], []>} : vector<2x256xf32>, vector<256x64xf32>, vector<2x64xf32> -> vector<2x64xf32>
    %c0_15 = arith.constant 0 : index
    %c0_16 = arith.constant 0 : index
    %17 = vector.load %arg7[%c0_15, %c0_16] : memref<1x64xf32, #tpu.memory_space<vmem>>, vector<1x64xf32>
    %18 = vector.broadcast %17 : vector<1x64xf32> to vector<2x64xf32>
    %19 = arith.addf %16, %18 : vector<2x64xf32>
    %c0_17 = arith.constant 0 : index
    %c0_18 = arith.constant 0 : index
    %20 = vector.load %arg8[%c0_17, %c0_18] : memref<2x64xf32, #tpu.memory_space<vmem>>, vector<2x64xf32>
    tpu.vector_store %arg8[%c0_17, %c0_18], %19 {strides = array<i32>} : memref<2x64xf32, #tpu.memory_space<vmem>>, vector<2x64xf32>,
    return
  }
  func.func @transform_0(%arg0: i32) -> (i32, i32) {
    %c0_i32 = arith.constant 0 : i32
    %c0_i32_0 = arith.constant 0 : i32
    return %arg0, %c0_i32 : i32, i32
  }
  func.func @transform_1(%arg0: i32) -> (i32, i32) {
    %c0_i32 = arith.constant 0 : i32
    %c0_i32_0 = arith.constant 0 : i32
    %c0_i32_1 = arith.constant 0 : i32
    return %c0_i32, %c0_i32_0 : i32, i32
  }
  func.func @transform_2(%arg0: i32) -> (i32, i32) {
    %c0_i32 = arith.constant 0 : i32
    %c0_i32_0 = arith.constant 0 : i32
    %c0_i32_1 = arith.constant 0 : i32
    return %c0_i32, %c0_i32_0 : i32, i32
  }
  func.func @transform_3(%arg0: i32) -> (i32, i32) {
    %c0_i32 = arith.constant 0 : i32
    %c0_i32_0 = arith.constant 0 : i32
    %c0_i32_1 = arith.constant 0 : i32
    return %c0_i32, %c0_i32_0 : i32, i32
  }
  func.func @transform_4(%arg0: i32) -> (i32, i32) {
    %c0_i32 = arith.constant 0 : i32
    %c0_i32_0 = arith.constant 0 : i32
    %c0_i32_1 = arith.constant 0 : i32
    return %c0_i32, %c0_i32_0 : i32, i32
  }
  func.func @transform_5(%arg0: i32) -> (i32, i32) {
    %c0_i32 = arith.constant 0 : i32
    %c0_i32_0 = arith.constant 0 : i32
    %c0_i32_1 = arith.constant 0 : i32
    return %c0_i32, %c0_i32_0 : i32, i32
  }
  func.func @transform_6(%arg0: i32) -> (i32, i32) {
    %c0_i32 = arith.constant 0 : i32
    %c0_i32_0 = arith.constant 0 : i32
    %c0_i32_1 = arith.constant 0 : i32
    return %c0_i32, %c0_i32_0 : i32, i32
  }
  func.func @transform_7(%arg0: i32) -> (i32, i32) {
    %c0_i32 = arith.constant 0 : i32
    %c0_i32_0 = arith.constant 0 : i32
    return %arg0, %c0_i32 : i32, i32
  }
}

</mosaic_0001>

<llo_original>
// kernel: _encoder_forward.1
$region0: #{_encoder_forward.1}
  #allocation0 [shape = 'u32[]', space=smem, size = 0x4, offset = 0x4, fixed_abs, tag = 'smem constant byte address 0x4 - core index']
  #allocation1 [shape = 'u32[72,128]{1,0:T(1,128)}', space=vmem, size = 0x9000, scoped, tag = 'internal scratch']
  %s0 = inlined_call_operand.vmem [shape: f32[2,1024], index: 0, kind: input, shape index: {}]
  %s1 = inlined_call_operand.hbm [shape: f32[1024,512], index: 1, kind: input, shape index: {}]
  %s2 = inlined_call_operand.hbm [shape: f32[1,512], index: 2, kind: input, shape index: {}]
  %s3 = inlined_call_operand.hbm [shape: f32[512,256], index: 3, kind: input, shape index: {}]
  %s4 = inlined_call_operand.hbm [shape: f32[1,256], index: 4, kind: input, shape index: {}]
  %s5 = inlined_call_operand.vmem [shape: f32[256,64], index: 5, kind: input, shape index: {}]
  %s6 = inlined_call_operand.hbm [shape: f32[1,64], index: 6, kind: input, shape index: {}]
  %s7 = inlined_call_operand.vmem [shape: f32[2,64], index: 7, kind: output, shape index: {}]
  %s8 = sld [smem:[#allocation0]]
  $region58: #{_encoder_forward.1} parent=0
    _
  %s10 = ssub.s32 1, %s8
  %s11 = scalar_select 0, %s10, %s8
  $region1: #{_encoder_forward.1} parent=0
    #allocation2 [shape = 'u8[2097152]{0}', space=vmem, size = 0x200000, scoped, tag = 'input window, operand 1, single buffered']
    #allocation3 [shape = 's32[1]{0}', space=sflag, size = 0x4, scoped, tag = 'scoped memory for _encoder_forward.1']
    #allocation4 [shape = 'u8[2048]{0}', space=vmem, size = 0x800, scoped, tag = 'input window, operand 2, single buffered']
    #allocation5 [shape = 's32[1]{0}', space=sflag, size = 0x4, scoped, tag = 'scoped memory for _encoder_forward.1']
    #allocation6 [shape = 'u8[524288]{0}', space=vmem, size = 0x80000, scoped, tag = 'input window, operand 3, single buffered']
    #allocation7 [shape = 'u8[1024]{0}', space=vmem, size = 0x400, scoped, tag = 'input window, operand 4, single buffered']
    #allocation8 [shape = 's32[1]{0}', space=sflag, size = 0x4, scoped, tag = 'scoped memory for _encoder_forward.1']
    #allocation9 [shape = 'u8[512]{0}', space=vmem, size = 0x400, scoped, tag = 'input window, operand 6, single buffered']
    %12 = vsyncpa [#allocation3], 0
    %13 = vsyncpa [#allocation5], 0
    %14 = vsyncpa [#allocation8], 0
    // Predicated region
    $region2: #{_encoder_forward.1} parent=1 // pred_check
      _
    $region3: #{_encoder_forward.1} parent=1 // pred_check_branch
      %16 = sbr.rel (0) target = $region5
    $region4: #{_encoder_forward.1} parent=1 // pred_region
      _
    $region5: #{_encoder_forward.1} parent=1 // pred_fallthru
      _
    // Predicated region
    $region6: #{_encoder_forward.1} parent=1 // pred_check
      _
    $region7: #{_encoder_forward.1} parent=1 // pred_check_branch
      %18 = sbr.rel (0) target = $region9
    $region8: #{_encoder_forward.1} parent=1 // pred_region
      %20 = vsyncadd [#allocation3], 0
      %s21 = sshll.u32 %s1, 4
      %s22 = int_to_ptr.hbm [resolvable:$true] %s21
      %s23 = sshll.u32 [#allocation2], 4
      %s24 = int_to_ptr.vmem [resolvable:$true] %s23
      %29 = dma.hbm_to_vmem [thread:$0]  %s22, 65536, %s24, [#allocation3], 512, 512, 32
    $region9: #{_encoder_forward.1} parent=1 // pred_fallthru
      _
    // Predicated region
    $region10: #{_encoder_forward.1} parent=1 // pred_check
      _
    $region11: #{_encoder_forward.1} parent=1 // pred_check_branch
      %31 = sbr.rel (0) target = $region13
    $region12: #{_encoder_forward.1} parent=1 // pred_region
      %33 = vsyncadd [#allocation5], 0
      %s35 = sshll.u32 %s2, 4
      %s36 = int_to_ptr.hbm [resolvable:$true] %s35
      %s37 = sshll.u32 [#allocation4], 4
      %s38 = int_to_ptr.vmem [resolvable:$true] %s37
      %40 = dma.hbm_to_vmem [thread:$0]  %s36, 64, %s38, [#allocation5]
    $region13: #{_encoder_forward.1} parent=1 // pred_fallthru
      _
    // Predicated region
    $region14: #{_encoder_forward.1} parent=1 // pred_check
      _
    $region15: #{_encoder_forward.1} parent=1 // pred_check_branch
      %42 = sbr.rel (0) target = $region17
    $region16: #{_encoder_forward.1} parent=1 // pred_region
      %44 = vsyncadd [#allocation5], 0
      %s45 = sshll.u32 %s3, 4
      %s46 = int_to_ptr.hbm [resolvable:$true] %s45
      %s47 = sshll.u32 [#allocation6], 4
      %s48 = int_to_ptr.vmem [resolvable:$true] %s47
      %53 = dma.hbm_to_vmem [thread:$0]  %s46, 16384, %s48, [#allocation5], 256, 256, 16
    $region17: #{_encoder_forward.1} parent=1 // pred_fallthru
      _
    // Predicated region
    $region18: #{_encoder_forward.1} parent=1 // pred_check
      _
    $region19: #{_encoder_forward.1} parent=1 // pred_check_branch
      %55 = sbr.rel (0) target = $region21
    $region20: #{_encoder_forward.1} parent=1 // pred_region
      %57 = vsyncadd [#allocation8], 0
      %s59 = sshll.u32 %s4, 4
      %s60 = int_to_ptr.hbm [resolvable:$true] %s59
      %s61 = sshll.u32 [#allocation7], 4
      %s62 = int_to_ptr.vmem [resolvable:$true] %s61
      %64 = dma.hbm_to_vmem [thread:$0]  %s60, 32, %s62, [#allocation8]
    $region21: #{_encoder_forward.1} parent=1 // pred_fallthru
      _
    // Predicated region
    $region22: #{_encoder_forward.1} parent=1 // pred_check
      _
    $region23: #{_encoder_forward.1} parent=1 // pred_check_branch
      %66 = sbr.rel (0) target = $region25
    $region24: #{_encoder_forward.1} parent=1 // pred_region
      _
    $region25: #{_encoder_forward.1} parent=1 // pred_fallthru
      _
    // Predicated region
    $region26: #{_encoder_forward.1} parent=1 // pred_check
      _
    $region27: #{_encoder_forward.1} parent=1 // pred_check_branch
      %68 = sbr.rel (0) target = $region29
    $region28: #{_encoder_forward.1} parent=1 // pred_region
      %70 = vsyncadd [#allocation8], 0
      %s72 = sshll.u32 %s6, 4
      %s73 = int_to_ptr.hbm [resolvable:$true] %s72
      %s74 = sshll.u32 [#allocation9], 4
      %s75 = int_to_ptr.vmem [resolvable:$true] %s74
      %77 = dma.hbm_to_vmem [thread:$0]  %s73, 16, %s75, [#allocation8]
    $region29: #{_encoder_forward.1} parent=1 // pred_fallthru
      _
    // Predicated region
    $region30: #{_encoder_forward.1} parent=1 // pred_check
      _
    $region31: #{_encoder_forward.1} parent=1 // pred_check_branch
      %79 = sbr.rel (0) target = $region33
    $region32: #{_encoder_forward.1} parent=1 // pred_region
      %81 = dma.done [#allocation3], 65536
    $region33: #{_encoder_forward.1} parent=1 // pred_fallthru
      _
    // Predicated region
    $region34: #{_encoder_forward.1} parent=1 // pred_check
      _
    $region35: #{_encoder_forward.1} parent=1 // pred_check_branch
      %83 = sbr.rel (0) target = $region37
    $region36: #{_encoder_forward.1} parent=1 // pred_region
      %85 = dma.done [#allocation5], 64
    $region37: #{_encoder_forward.1} parent=1 // pred_fallthru
      _
    // Predicated region
    $region38: #{_encoder_forward.1} parent=1 // pred_check
      _
    $region39: #{_encoder_forward.1} parent=1 // pred_check_branch
      %87 = sbr.rel (0) target = $region41
    $region40: #{_encoder_forward.1} parent=1 // pred_region
      %89 = dma.done [#allocation5], 16384
    $region41: #{_encoder_forward.1} parent=1 // pred_fallthru
      _
    // Predicated region
    $region42: #{_encoder_forward.1} parent=1 // pred_check
      _
    $region43: #{_encoder_forward.1} parent=1 // pred_check_branch
      %91 = sbr.rel (0) target = $region45
    $region44: #{_encoder_forward.1} parent=1 // pred_region
      %93 = dma.done [#allocation8], 32
    $region45: #{_encoder_forward.1} parent=1 // pred_fallthru
      _
    // Predicated region
    $region46: #{_encoder_forward.1} parent=1 // pred_check
      _
    $region47: #{_encoder_forward.1} parent=1 // pred_check_branch
      %95 = sbr.rel (0) target = $region49
    $region48: #{_encoder_forward.1} parent=1 // pred_region
      %97 = dma.done [#allocation8], 16
    $region49: #{_encoder_forward.1} parent=1 // pred_fallthru
      _
    %v98 = vld [vmem:[%s0] sm:$0xff]
    %v99 = vld [vmem:[%s0 + $0x8] sm:$0xff]
    %v100 = vld [vmem:[#allocation2] sm:$0xff]
    %v101 = vld [vmem:[#allocation2 + $0x8] sm:$0xff]
    %v102 = vld [vmem:[#allocation2 + $0x10] sm:$0xff]
    %v103 = vld [vmem:[#allocation2 + $0x18] sm:$0xff]
    %v104 = vld [vmem:[#allocation2 + $0x20] sm:$0xff]
    %v105 = vld [vmem:[#allocation2 + $0x28] sm:$0xff]
    %v106 = vld [vmem:[#allocation2 + $0x30] sm:$0xff]
    %v107 = vld [vmem:[#allocation2 + $0x38] sm:$0xff]
    %v108 = vld [vmem:[#allocation2 + $0x40] sm:$0xff]
    %v109 = vld [vmem:[#allocation2 + $0x48] sm:$0xff]
    %v110 = vld [vmem:[#allocation2 + $0x50] sm:$0xff]
    %v111 = vld [vmem:[#allocation2 + $0x58] sm:$0xff]
    %v112 = vld [vmem:[#allocation2 + $0x60] sm:$0xff]
    %v113 = vld [vmem:[#allocation2 + $0x68] sm:$0xff]
    %v114 = vld [vmem:[#allocation2 + $0x70] sm:$0xff]
    %v115 = vld [vmem:[#allocation2 + $0x78] sm:$0xff]
    %v116 = vld [vmem:[#allocation2 + $0x80] sm:$0xff]
    %v117 = vld [vmem:[#allocation2 + $0x88] sm:$0xff]
    %v118 = vld [vmem:[#allocation2 + $0x90] sm:$0xff]
    %v119 = vld [vmem:[#allocation2 + $0x98] sm:$0xff]
    %v120 = vld [vmem:[#allocation2 + $0xa0] sm:$0xff]
    %v121 = vld [vmem:[#allocation2 + $0xa8] sm:$0xff]
    %v122 = vld [vmem:[#allocation2 + $0xb0] sm:$0xff]
    %v123 = vld [vmem:[#allocation2 + $0xb8] sm:$0xff]
    %v124 = vld [vmem:[#allocation2 + $0xc0] sm:$0xff]
    %v125 = vld [vmem:[#allocation2 + $0xc8] sm:$0xff]
    %v126 = vld [vmem:[#allocation2 + $0xd0] sm:$0xff]
    %v127 = vld [vmem:[#allocation2 + $0xd8] sm:$0xff]
    %v128 = vld [vmem:[#allocation2 + $0xe0] sm:$0xff]
    %v129 = vld [vmem:[#allocation2 + $0xe8] sm:$0xff]
    %v130 = vld [vmem:[#allocation2 + $0xf0] sm:$0xff]
    %v131 = vld [vmem:[#allocation2 + $0xf8] sm:$0xff]
    %v132 = vld [vmem:[#allocation2 + $0x100] sm:$0xff]
    %v133 = vld [vmem:[#allocation2 + $0x108] sm:$0xff]
    %v134 = vld [vmem:[#allocation2 + $0x110] sm:$0xff]
    %v135 = vld [vmem:[#allocation2 + $0x118] sm:$0xff]
    %v136 = vld [vmem:[#allocation2 + $0x120] sm:$0xff]
    %v137 = vld [vmem:[#allocation2 + $0x128] sm:$0xff]
    %v138 = vld [vmem:[#allocation2 + $0x130] sm:$0xff]
    %v139 = vld [vmem:[#allocation2 + $0x138] sm:$0xff]
    %v140 = vld [vmem:[#allocation2 + $0x140] sm:$0xff]
    %v141 = vld [vmem:[#allocation2 + $0x148] sm:$0xff]
    %v142 = vld [vmem:[#allocation2 + $0x150] sm:$0xff]
    %v143 = vld [vmem:[#allocation2 + $0x158] sm:$0xff]
    %v144 = vld [vmem:[#allocation2 + $0x160] sm:$0xff]
    %v145 = vld [vmem:[#allocation2 + $0x168] sm:$0xff]
    %v146 = vld [vmem:[#allocation2 + $0x170] sm:$0xff]
    %v147 = vld [vmem:[#allocation2 + $0x178] sm:$0xff]
    %v148 = vld [vmem:[#allocation2 + $0x180] sm:$0xff]
    %v149 = vld [vmem:[#allocation2 + $0x188] sm:$0xff]
    %v150 = vld [vmem:[#allocation2 + $0x190] sm:$0xff]
    %v151 = vld [vmem:[#allocation2 + $0x198] sm:$0xff]
    %v152 = vld [vmem:[#allocation2 + $0x1a0] sm:$0xff]
    %v153 = vld [vmem:[#allocation2 + $0x1a8] sm:$0xff]
    %v154 = vld [vmem:[#allocation2 + $0x1b0] sm:$0xff]
    %v155 = vld [vmem:[#allocation2 + $0x1b8] sm:$0xff]
    %v156 = vld [vmem:[#allocation2 + $0x1c0] sm:$0xff]
    %v157 = vld [vmem:[#allocation2 + $0x1c8] sm:$0xff]
    %v158 = vld [vmem:[#allocation2 + $0x1d0] sm:$0xff]
    %v159 = vld [vmem:[#allocation2 + $0x1d8] sm:$0xff]
    %v160 = vld [vmem:[#allocation2 + $0x1e0] sm:$0xff]
    %v161 = vld [vmem:[#allocation2 + $0x1e8] sm:$0xff]
    %v162 = vld [vmem:[#allocation2 + $0x1f0] sm:$0xff]
    %v163 = vld [vmem:[#allocation2 + $0x1f8] sm:$0xff]
    %v164 = vld [vmem:[#allocation2 + $0x200] sm:$0xff]
    %v165 = vld [vmem:[#allocation2 + $0x208] sm:$0xff]
    %v166 = vld [vmem:[#allocation2 + $0x210] sm:$0xff]
    %v167 = vld [vmem:[#allocation2 + $0x218] sm:$0xff]
    %v168 = vld [vmem:[#allocation2 + $0x220] sm:$0xff]
    %v169 = vld [vmem:[#allocation2 + $0x228] sm:$0xff]
    %v170 = vld [vmem:[#allocation2 + $0x230] sm:$0xff]
    %v171 = vld [vmem:[#allocation2 + $0x238] sm:$0xff]
    %v172 = vld [vmem:[#allocation2 + $0x240] sm:$0xff]
    %v173 = vld [vmem:[#allocation2 + $0x248] sm:$0xff]
    %v174 = vld [vmem:[#allocation2 + $0x250] sm:$0xff]
    %v175 = vld [vmem:[#allocation2 + $0x258] sm:$0xff]
    %v176 = vld [vmem:[#allocation2 + $0x260] sm:$0xff]
    %v177 = vld [vmem:[#allocation2 + $0x268] sm:$0xff]
    %v178 = vld [vmem:[#allocation2 + $0x270] sm:$0xff]
    %v179 = vld [vmem:[#allocation2 + $0x278] sm:$0xff]
    %v180 = vld [vmem:[#allocation2 + $0x280] sm:$0xff]
    %v181 = vld [vmem:[#allocation2 + $0x288] sm:$0xff]
    %v182 = vld [vmem:[#allocation2 + $0x290] sm:$0xff]
    %v183 = vld [vmem:[#allocation2 + $0x298] sm:$0xff]
    %v184 = vld [vmem:[#allocation2 + $0x2a0] sm:$0xff]
    %v185 = vld [vmem:[#allocation2 + $0x2a8] sm:$0xff]
    %v186 = vld [vmem:[#allocation2 + $0x2b0] sm:$0xff]
    %v187 = vld [vmem:[#allocation2 + $0x2b8] sm:$0xff]
    %v188 = vld [vmem:[#allocation2 + $0x2c0] sm:$0xff]
    %v189 = vld [vmem:[#allocation2 + $0x2c8] sm:$0xff]
    %v190 = vld [vmem:[#allocation2 + $0x2d0] sm:$0xff]
    %v191 = vld [vmem:[#allocation2 + $0x2d8] sm:$0xff]
    %v192 = vld [vmem:[#allocation2 + $0x2e0] sm:$0xff]
    %v193 = vld [vmem:[#allocation2 + $0x2e8] sm:$0xff]
    %v194 = vld [vmem:[#allocation2 + $0x2f0] sm:$0xff]
    %v195 = vld [vmem:[#allocation2 + $0x2f8] sm:$0xff]
    %v196 = vld [vmem:[#allocation2 + $0x300] sm:$0xff]
    %v197 = vld [vmem:[#allocation2 + $0x308] sm:$0xff]
    %v198 = vld [vmem:[#allocation2 + $0x310] sm:$0xff]
    %v199 = vld [vmem:[#allocation2 + $0x318] sm:$0xff]
    %v200 = vld [vmem:[#allocation2 + $0x320] sm:$0xff]
    %v201 = vld [vmem:[#allocation2 + $0x328] sm:$0xff]
    %v202 = vld [vmem:[#allocation2 + $0x330] sm:$0xff]
    %v203 = vld [vmem:[#allocation2 + $0x338] sm:$0xff]
    %v204 = vld [vmem:[#allocation2 + $0x340] sm:$0xff]
    %v205 = vld [vmem:[#allocation2 + $0x348] sm:$0xff]
    %v206 = vld [vmem:[#allocation2 + $0x350] sm:$0xff]
    %v207 = vld [vmem:[#allocation2 + $0x358] sm:$0xff]
    %v208 = vld [vmem:[#allocation2 + $0x360] sm:$0xff]
    %v209 = vld [vmem:[#allocation2 + $0x368] sm:$0xff]
    %v210 = vld [vmem:[#allocation2 + $0x370] sm:$0xff]
    %v211 = vld [vmem:[#allocation2 + $0x378] sm:$0xff]
    %v212 = vld [vmem:[#allocation2 + $0x380] sm:$0xff]
    %v213 = vld [vmem:[#allocation2 + $0x388] sm:$0xff]
    %v214 = vld [vmem:[#allocation2 + $0x390] sm:$0xff]
    %v215 = vld [vmem:[#allocation2 + $0x398] sm:$0xff]
    %v216 = vld [vmem:[#allocation2 + $0x3a0] sm:$0xff]
    %v217 = vld [vmem:[#allocation2 + $0x3a8] sm:$0xff]
    %v218 = vld [vmem:[#allocation2 + $0x3b0] sm:$0xff]
    %v219 = vld [vmem:[#allocation2 + $0x3b8] sm:$0xff]
    %v220 = vld [vmem:[#allocation2 + $0x3c0] sm:$0xff]
    %v221 = vld [vmem:[#allocation2 + $0x3c8] sm:$0xff]
    %v222 = vld [vmem:[#allocation2 + $0x3d0] sm:$0xff]
    %v223 = vld [vmem:[#allocation2 + $0x3d8] sm:$0xff]
    %v224 = vld [vmem:[#allocation2 + $0x3e0] sm:$0xff]
    %v225 = vld [vmem:[#allocation2 + $0x3e8] sm:$0xff]
    %v226 = vld [vmem:[#allocation2 + $0x3f0] sm:$0xff]
    %v227 = vld [vmem:[#allocation2 + $0x3f8] sm:$0xff]
    %v228 = vld [vmem:[#allocation2 + $0x400] sm:$0xff]
    %v229 = vld [vmem:[#allocation2 + $0x408] sm:$0xff]
    %v230 = vld [vmem:[#allocation2 + $0x410] sm:$0xff]
    %v231 = vld [vmem:[#allocation2 + $0x418] sm:$0xff]
    %v232 = vld [vmem:[#allocation2 + $0x420] sm:$0xff]
    %v233 = vld [vmem:[#allocation2 + $0x428] sm:$0xff]
    %v234 = vld [vmem:[#allocation2 + $0x430] sm:$0xff]
    %v235 = vld [vmem:[#allocation2 + $0x438] sm:$0xff]
    %v236 = vld [vmem:[#allocation2 + $0x440] sm:$0xff]
    %v237 = vld [vmem:[#allocation2 + $0x448] sm:$0xff]
    %v238 = vld [vmem:[#allocation2 + $0x450] sm:$0xff]
    %v239 = vld [vmem:[#allocation2 + $0x458] sm:$0xff]
    %v240 = vld [vmem:[#allocation2 + $0x460] sm:$0xff]
    %v241 = vld [vmem:[#allocation2 + $0x468] sm:$0xff]
    %v242 = vld [vmem:[#allocation2 + $0x470] sm:$0xff]
    %v243 = vld [vmem:[#allocation2 + $0x478] sm:$0xff]
    %v244 = vld [vmem:[#allocation2 + $0x480] sm:$0xff]
    %v245 = vld [vmem:[#allocation2 + $0x488] sm:$0xff]
    %v246 = vld [vmem:[#allocation2 + $0x490] sm:$0xff]
    %v247 = vld [vmem:[#allocation2 + $0x498] sm:$0xff]
    %v248 = vld [vmem:[#allocation2 + $0x4a0] sm:$0xff]
    %v249 = vld [vmem:[#allocation2 + $0x4a8] sm:$0xff]
    %v250 = vld [vmem:[#allocation2 + $0x4b0] sm:$0xff]
    %v251 = vld [vmem:[#allocation2 + $0x4b8] sm:$0xff]
    %v252 = vld [vmem:[#allocation2 + $0x4c0] sm:$0xff]
    %v253 = vld [vmem:[#allocation2 + $0x4c8] sm:$0xff]
    %v254 = vld [vmem:[#allocation2 + $0x4d0] sm:$0xff]
    %v255 = vld [vmem:[#allocation2 + $0x4d8] sm:$0xff]
    %v256 = vld [vmem:[#allocation2 + $0x4e0] sm:$0xff]
    %v257 = vld [vmem:[#allocation2 + $0x4e8] sm:$0xff]
    %v258 = vld [vmem:[#allocation2 + $0x4f0] sm:$0xff]
    %v259 = vld [vmem:[#allocation2 + $0x4f8] sm:$0xff]
    %v260 = vld [vmem:[#allocation2 + $0x500] sm:$0xff]
    %v261 = vld [vmem:[#allocation2 + $0x508] sm:$0xff]
    %v262 = vld [vmem:[#allocation2 + $0x510] sm:$0xff]
    %v263 = vld [vmem:[#allocation2 + $0x518] sm:$0xff]
    %v264 = vld [vmem:[#allocation2 + $0x520] sm:$0xff]
    %v265 = vld [vmem:[#allocation2 + $0x528] sm:$0xff]
    %v266 = vld [vmem:[#allocation2 + $0x530] sm:$0xff]
    %v267 = vld [vmem:[#allocation2 + $0x538] sm:$0xff]
    %v268 = vld [vmem:[#allocation2 + $0x540] sm:$0xff]
    %v269 = vld [vmem:[#allocation2 + $0x548] sm:$0xff]
    %v270 = vld [vmem:[#allocation2 + $0x550] sm:$0xff]
    %v271 = vld [vmem:[#allocation2 + $0x558] sm:$0xff]
    %v272 = vld [vmem:[#allocation2 + $0x560] sm:$0xff]
    %v273 = vld [vmem:[#allocation2 + $0x568] sm:$0xff]
    %v274 = vld [vmem:[#allocation2 + $0x570] sm:$0xff]
    %v275 = vld [vmem:[#allocation2 + $0x578] sm:$0xff]
    %v276 = vld [vmem:[#allocation2 + $0x580] sm:$0xff]
    %v277 = vld [vmem:[#allocation2 + $0x588] sm:$0xff]
    %v278 = vld [vmem:[#allocation2 + $0x590] sm:$0xff]
    %v279 = vld [vmem:[#allocation2 + $0x598] sm:$0xff]
    %v280 = vld [vmem:[#allocation2 + $0x5a0] sm:$0xff]
    %v281 = vld [vmem:[#allocation2 + $0x5a8] sm:$0xff]
    %v282 = vld [vmem:[#allocation2 + $0x5b0] sm:$0xff]
    %v283 = vld [vmem:[#allocation2 + $0x5b8] sm:$0xff]
    %v284 = vld [vmem:[#allocation2 + $0x5c0] sm:$0xff]
    %v285 = vld [vmem:[#allocation2 + $0x5c8] sm:$0xff]
    %v286 = vld [vmem:[#allocation2 + $0x5d0] sm:$0xff]
    %v287 = vld [vmem:[#allocation2 + $0x5d8] sm:$0xff]
    %v288 = vld [vmem:[#allocation2 + $0x5e0] sm:$0xff]
    %v289 = vld [vmem:[#allocation2 + $0x5e8] sm:$0xff]
    %v290 = vld [vmem:[#allocation2 + $0x5f0] sm:$0xff]
    %v291 = vld [vmem:[#allocation2 + $0x5f8] sm:$0xff]
    %v292 = vld [vmem:[#allocation2 + $0x600] sm:$0xff]
    %v293 = vld [vmem:[#allocation2 + $0x608] sm:$0xff]
    %v294 = vld [vmem:[#allocation2 + $0x610] sm:$0xff]
    %v295 = vld [vmem:[#allocation2 + $0x618] sm:$0xff]
    %v296 = vld [vmem:[#allocation2 + $0x620] sm:$0xff]
    %v297 = vld [vmem:[#allocation2 + $0x628] sm:$0xff]
    %v298 = vld [vmem:[#allocation2 + $0x630] sm:$0xff]
    %v299 = vld [vmem:[#allocation2 + $0x638] sm:$0xff]
    %v300 = vld [vmem:[#allocation2 + $0x640] sm:$0xff]
    %v301 = vld [vmem:[#allocation2 + $0x648] sm:$0xff]
    %v302 = vld [vmem:[#allocation2 + $0x650] sm:$0xff]
    %v303 = vld [vmem:[#allocation2 + $0x658] sm:$0xff]
    %v304 = vld [vmem:[#allocation2 + $0x660] sm:$0xff]
    %v305 = vld [vmem:[#allocation2 + $0x668] sm:$0xff]
    %v306 = vld [vmem:[#allocation2 + $0x670] sm:$0xff]
    %v307 = vld [vmem:[#allocation2 + $0x678] sm:$0xff]
    %v308 = vld [vmem:[#allocation2 + $0x680] sm:$0xff]
    %v309 = vld [vmem:[#allocation2 + $0x688] sm:$0xff]
    %v310 = vld [vmem:[#allocation2 + $0x690] sm:$0xff]
    %v311 = vld [vmem:[#allocation2 + $0x698] sm:$0xff]
    %v312 = vld [vmem:[#allocation2 + $0x6a0] sm:$0xff]
    %v313 = vld [vmem:[#allocation2 + $0x6a8] sm:$0xff]
    %v314 = vld [vmem:[#allocation2 + $0x6b0] sm:$0xff]
    %v315 = vld [vmem:[#allocation2 + $0x6b8] sm:$0xff]
    %v316 = vld [vmem:[#allocation2 + $0x6c0] sm:$0xff]
    %v317 = vld [vmem:[#allocation2 + $0x6c8] sm:$0xff]
    %v318 = vld [vmem:[#allocation2 + $0x6d0] sm:$0xff]
    %v319 = vld [vmem:[#allocation2 + $0x6d8] sm:$0xff]
    %v320 = vld [vmem:[#allocation2 + $0x6e0] sm:$0xff]
    %v321 = vld [vmem:[#allocation2 + $0x6e8] sm:$0xff]
    %v322 = vld [vmem:[#allocation2 + $0x6f0] sm:$0xff]
    %v323 = vld [vmem:[#allocation2 + $0x6f8] sm:$0xff]
    %v324 = vld [vmem:[#allocation2 + $0x700] sm:$0xff]
    %v325 = vld [vmem:[#allocation2 + $0x708] sm:$0xff]
    %v326 = vld [vmem:[#allocation2 + $0x710] sm:$0xff]
    %v327 = vld [vmem:[#allocation2 + $0x718] sm:$0xff]
    %v328 = vld [vmem:[#allocation2 + $0x720] sm:$0xff]
    %v329 = vld [vmem:[#allocation2 + $0x728] sm:$0xff]
    %v330 = vld [vmem:[#allocation2 + $0x730] sm:$0xff]
    %v331 = vld [vmem:[#allocation2 + $0x738] sm:$0xff]
    %v332 = vld [vmem:[#allocation2 + $0x740] sm:$0xff]
    %v333 = vld [vmem:[#allocation2 + $0x748] sm:$0xff]
    %v334 = vld [vmem:[#allocation2 + $0x750] sm:$0xff]
    %v335 = vld [vmem:[#allocation2 + $0x758] sm:$0xff]
    %v336 = vld [vmem:[#allocation2 + $0x760] sm:$0xff]
    %v337 = vld [vmem:[#allocation2 + $0x768] sm:$0xff]
    %v338 = vld [vmem:[#allocation2 + $0x770] sm:$0xff]
    %v339 = vld [vmem:[#allocation2 + $0x778] sm:$0xff]
    %v340 = vld [vmem:[#allocation2 + $0x780] sm:$0xff]
    %v341 = vld [vmem:[#allocation2 + $0x788] sm:$0xff]
    %v342 = vld [vmem:[#allocation2 + $0x790] sm:$0xff]
    %v343 = vld [vmem:[#allocation2 + $0x798] sm:$0xff]
    %v344 = vld [vmem:[#allocation2 + $0x7a0] sm:$0xff]
    %v345 = vld [vmem:[#allocation2 + $0x7a8] sm:$0xff]
    %v346 = vld [vmem:[#allocation2 + $0x7b0] sm:$0xff]
    %v347 = vld [vmem:[#allocation2 + $0x7b8] sm:$0xff]
    %v348 = vld [vmem:[#allocation2 + $0x7c0] sm:$0xff]
    %v349 = vld [vmem:[#allocation2 + $0x7c8] sm:$0xff]
    %v350 = vld [vmem:[#allocation2 + $0x7d0] sm:$0xff]
    %v351 = vld [vmem:[#allocation2 + $0x7d8] sm:$0xff]
    %v352 = vld [vmem:[#allocation2 + $0x7e0] sm:$0xff]
    %v353 = vld [vmem:[#allocation2 + $0x7e8] sm:$0xff]
    %v354 = vld [vmem:[#allocation2 + $0x7f0] sm:$0xff]
    %v355 = vld [vmem:[#allocation2 + $0x7f8] sm:$0xff]
    %v356 = vld [vmem:[#allocation2 + $0x800] sm:$0xff]
    %v357 = vld [vmem:[#allocation2 + $0x808] sm:$0xff]
    %v358 = vld [vmem:[#allocation2 + $0x810] sm:$0xff]
    %v359 = vld [vmem:[#allocation2 + $0x818] sm:$0xff]
    %v360 = vld [vmem:[#allocation2 + $0x820] sm:$0xff]
    %v361 = vld [vmem:[#allocation2 + $0x828] sm:$0xff]
    %v362 = vld [vmem:[#allocation2 + $0x830] sm:$0xff]
    %v363 = vld [vmem:[#allocation2 + $0x838] sm:$0xff]
    %v364 = vld [vmem:[#allocation2 + $0x840] sm:$0xff]
    %v365 = vld [vmem:[#allocation2 + $0x848] sm:$0xff]
    %v366 = vld [vmem:[#allocation2 + $0x850] sm:$0xff]
    %v367 = vld [vmem:[#allocation2 + $0x858] sm:$0xff]
    %v368 = vld [vmem:[#allocation2 + $0x860] sm:$0xff]
    %v369 = vld [vmem:[#allocation2 + $0x868] sm:$0xff]
    %v370 = vld [vmem:[#allocation2 + $0x870] sm:$0xff]
    %v371 = vld [vmem:[#allocation2 + $0x878] sm:$0xff]
    %v372 = vld [vmem:[#allocation2 + $0x880] sm:$0xff]
    %v373 = vld [vmem:[#allocation2 + $0x888] sm:$0xff]
    %v374 = vld [vmem:[#allocation2 + $0x890] sm:$0xff]
    %v375 = vld [vmem:[#allocation2 + $0x898] sm:$0xff]
    %v376 = vld [vmem:[#allocation2 + $0x8a0] sm:$0xff]
    %v377 = vld [vmem:[#allocation2 + $0x8a8] sm:$0xff]
    %v378 = vld [vmem:[#allocation2 + $0x8b0] sm:$0xff]
    %v379 = vld [vmem:[#allocation2 + $0x8b8] sm:$0xff]
    %v380 = vld [vmem:[#allocation2 + $0x8c0] sm:$0xff]
    %v381 = vld [vmem:[#allocation2 + $0x8c8] sm:$0xff]
    %v382 = vld [vmem:[#allocation2 + $0x8d0] sm:$0xff]
    %v383 = vld [vmem:[#allocation2 + $0x8d8] sm:$0xff]
    %v384 = vld [vmem:[#allocation2 + $0x8e0] sm:$0xff]
    %v385 = vld [vmem:[#allocation2 + $0x8e8] sm:$0xff]
    %v386 = vld [vmem:[#allocation2 + $0x8f0] sm:$0xff]
    %v387 = vld [vmem:[#allocation2 + $0x8f8] sm:$0xff]
    %v388 = vld [vmem:[#allocation2 + $0x900] sm:$0xff]
    %v389 = vld [vmem:[#allocation2 + $0x908] sm:$0xff]
    %v390 = vld [vmem:[#allocation2 + $0x910] sm:$0xff]
    %v391 = vld [vmem:[#allocation2 + $0x918] sm:$0xff]
    %v392 = vld [vmem:[#allocation2 + $0x920] sm:$0xff]
    %v393 = vld [vmem:[#allocation2 + $0x928] sm:$0xff]
    %v394 = vld [vmem:[#allocation2 + $0x930] sm:$0xff]
    %v395 = vld [vmem:[#allocation2 + $0x938] sm:$0xff]
    %v396 = vld [vmem:[#allocation2 + $0x940] sm:$0xff]
    %v397 = vld [vmem:[#allocation2 + $0x948] sm:$0xff]
    %v398 = vld [vmem:[#allocation2 + $0x950] sm:$0xff]
    %v399 = vld [vmem:[#allocation2 + $0x958] sm:$0xff]
    %v400 = vld [vmem:[#allocation2 + $0x960] sm:$0xff]
    %v401 = vld [vmem:[#allocation2 + $0x968] sm:$0xff]
    %v402 = vld [vmem:[#allocation2 + $0x970] sm:$0xff]
    %v403 = vld [vmem:[#allocation2 + $0x978] sm:$0xff]
    %v404 = vld [vmem:[#allocation2 + $0x980] sm:$0xff]
    %v405 = vld [vmem:[#allocation2 + $0x988] sm:$0xff]
    %v406 = vld [vmem:[#allocation2 + $0x990] sm:$0xff]
    %v407 = vld [vmem:[#allocation2 + $0x998] sm:$0xff]
    %v408 = vld [vmem:[#allocation2 + $0x9a0] sm:$0xff]
    %v409 = vld [vmem:[#allocation2 + $0x9a8] sm:$0xff]
    %v410 = vld [vmem:[#allocation2 + $0x9b0] sm:$0xff]
    %v411 = vld [vmem:[#allocation2 + $0x9b8] sm:$0xff]
    %v412 = vld [vmem:[#allocation2 + $0x9c0] sm:$0xff]
    %v413 = vld [vmem:[#allocation2 + $0x9c8] sm:$0xff]
    %v414 = vld [vmem:[#allocation2 + $0x9d0] sm:$0xff]
    %v415 = vld [vmem:[#allocation2 + $0x9d8] sm:$0xff]
    %v416 = vld [vmem:[#allocation2 + $0x9e0] sm:$0xff]
    %v417 = vld [vmem:[#allocation2 + $0x9e8] sm:$0xff]
    %v418 = vld [vmem:[#allocation2 + $0x9f0] sm:$0xff]
    %v419 = vld [vmem:[#allocation2 + $0x9f8] sm:$0xff]
    %v420 = vld [vmem:[#allocation2 + $0xa00] sm:$0xff]
    %v421 = vld [vmem:[#allocation2 + $0xa08] sm:$0xff]
    %v422 = vld [vmem:[#allocation2 + $0xa10] sm:$0xff]
    %v423 = vld [vmem:[#allocation2 + $0xa18] sm:$0xff]
    %v424 = vld [vmem:[#allocation2 + $0xa20] sm:$0xff]
    %v425 = vld [vmem:[#allocation2 + $0xa28] sm:$0xff]
    %v426 = vld [vmem:[#allocation2 + $0xa30] sm:$0xff]
    %v427 = vld [vmem:[#allocation2 + $0xa38] sm:$0xff]
    %v428 = vld [vmem:[#allocation2 + $0xa40] sm:$0xff]
    %v429 = vld [vmem:[#allocation2 + $0xa48] sm:$0xff]
    %v430 = vld [vmem:[#allocation2 + $0xa50] sm:$0xff]
    %v431 = vld [vmem:[#allocation2 + $0xa58] sm:$0xff]
    %v432 = vld [vmem:[#allocation2 + $0xa60] sm:$0xff]
    %v433 = vld [vmem:[#allocation2 + $0xa68] sm:$0xff]
    %v434 = vld [vmem:[#allocation2 + $0xa70] sm:$0xff]
    %v435 = vld [vmem:[#allocation2 + $0xa78] sm:$0xff]
    %v436 = vld [vmem:[#allocation2 + $0xa80] sm:$0xff]
    %v437 = vld [vmem:[#allocation2 + $0xa88] sm:$0xff]
    %v438 = vld [vmem:[#allocation2 + $0xa90] sm:$0xff]
    %v439 = vld [vmem:[#allocation2 + $0xa98] sm:$0xff]
    %v440 = vld [vmem:[#allocation2 + $0xaa0] sm:$0xff]
    %v441 = vld [vmem:[#allocation2 + $0xaa8] sm:$0xff]
    %v442 = vld [vmem:[#allocation2 + $0xab0] sm:$0xff]
    %v443 = vld [vmem:[#allocation2 + $0xab8] sm:$0xff]
    %v444 = vld [vmem:[#allocation2 + $0xac0] sm:$0xff]
    %v445 = vld [vmem:[#allocation2 + $0xac8] sm:$0xff]
    %v446 = vld [vmem:[#allocation2 + $0xad0] sm:$0xff]
    %v447 = vld [vmem:[#allocation2 + $0xad8] sm:$0xff]
    %v448 = vld [vmem:[#allocation2 + $0xae0] sm:$0xff]
    %v449 = vld [vmem:[#allocation2 + $0xae8] sm:$0xff]
    %v450 = vld [vmem:[#allocation2 + $0xaf0] sm:$0xff]
    %v451 = vld [vmem:[#allocation2 + $0xaf8] sm:$0xff]
    %v452 = vld [vmem:[#allocation2 + $0xb00] sm:$0xff]
    %v453 = vld [vmem:[#allocation2 + $0xb08] sm:$0xff]
    %v454 = vld [vmem:[#allocation2 + $0xb10] sm:$0xff]
    %v455 = vld [vmem:[#allocation2 + $0xb18] sm:$0xff]
    %v456 = vld [vmem:[#allocation2 + $0xb20] sm:$0xff]
    %v457 = vld [vmem:[#allocation2 + $0xb28] sm:$0xff]
    %v458 = vld [vmem:[#allocation2 + $0xb30] sm:$0xff]
    %v459 = vld [vmem:[#allocation2 + $0xb38] sm:$0xff]
    %v460 = vld [vmem:[#allocation2 + $0xb40] sm:$0xff]
    %v461 = vld [vmem:[#allocation2 + $0xb48] sm:$0xff]
    %v462 = vld [vmem:[#allocation2 + $0xb50] sm:$0xff]
    %v463 = vld [vmem:[#allocation2 + $0xb58] sm:$0xff]
    %v464 = vld [vmem:[#allocation2 + $0xb60] sm:$0xff]
    %v465 = vld [vmem:[#allocation2 + $0xb68] sm:$0xff]
    %v466 = vld [vmem:[#allocation2 + $0xb70] sm:$0xff]
    %v467 = vld [vmem:[#allocation2 + $0xb78] sm:$0xff]
    %v468 = vld [vmem:[#allocation2 + $0xb80] sm:$0xff]
    %v469 = vld [vmem:[#allocation2 + $0xb88] sm:$0xff]
    %v470 = vld [vmem:[#allocation2 + $0xb90] sm:$0xff]
    %v471 = vld [vmem:[#allocation2 + $0xb98] sm:$0xff]
    %v472 = vld [vmem:[#allocation2 + $0xba0] sm:$0xff]
    %v473 = vld [vmem:[#allocation2 + $0xba8] sm:$0xff]
    %v474 = vld [vmem:[#allocation2 + $0xbb0] sm:$0xff]
    %v475 = vld [vmem:[#allocation2 + $0xbb8] sm:$0xff]
    %v476 = vld [vmem:[#allocation2 + $0xbc0] sm:$0xff]
    %v477 = vld [vmem:[#allocation2 + $0xbc8] sm:$0xff]
    %v478 = vld [vmem:[#allocation2 + $0xbd0] sm:$0xff]
    %v479 = vld [vmem:[#allocation2 + $0xbd8] sm:$0xff]
    %v480 = vld [vmem:[#allocation2 + $0xbe0] sm:$0xff]
    %v481 = vld [vmem:[#allocation2 + $0xbe8] sm:$0xff]
    %v482 = vld [vmem:[#allocation2 + $0xbf0] sm:$0xff]
    %v483 = vld [vmem:[#allocation2 + $0xbf8] sm:$0xff]
    %v484 = vld [vmem:[#allocation2 + $0xc00] sm:$0xff]
    %v485 = vld [vmem:[#allocation2 + $0xc08] sm:$0xff]
    %v486 = vld [vmem:[#allocation2 + $0xc10] sm:$0xff]
    %v487 = vld [vmem:[#allocation2 + $0xc18] sm:$0xff]
    %v488 = vld [vmem:[#allocation2 + $0xc20] sm:$0xff]
    %v489 = vld [vmem:[#allocation2 + $0xc28] sm:$0xff]
    %v490 = vld [vmem:[#allocation2 + $0xc30] sm:$0xff]
    %v491 = vld [vmem:[#allocation2 + $0xc38] sm:$0xff]
    %v492 = vld [vmem:[#allocation2 + $0xc40] sm:$0xff]
    %v493 = vld [vmem:[#allocation2 + $0xc48] sm:$0xff]
    %v494 = vld [vmem:[#allocation2 + $0xc50] sm:$0xff]
    %v495 = vld [vmem:[#allocation2 + $0xc58] sm:$0xff]
    %v496 = vld [vmem:[#allocation2 + $0xc60] sm:$0xff]
    %v497 = vld [vmem:[#allocation2 + $0xc68] sm:$0xff]
    %v498 = vld [vmem:[#allocation2 + $0xc70] sm:$0xff]
    %v499 = vld [vmem:[#allocation2 + $0xc78] sm:$0xff]
    %v500 = vld [vmem:[#allocation2 + $0xc80] sm:$0xff]
    %v501 = vld [vmem:[#allocation2 + $0xc88] sm:$0xff]
    %v502 = vld [vmem:[#allocation2 + $0xc90] sm:$0xff]
    %v503 = vld [vmem:[#allocation2 + $0xc98] sm:$0xff]
    %v504 = vld [vmem:[#allocation2 + $0xca0] sm:$0xff]
    %v505 = vld [vmem:[#allocation2 + $0xca8] sm:$0xff]
    %v506 = vld [vmem:[#allocation2 + $0xcb0] sm:$0xff]
    %v507 = vld [vmem:[#allocation2 + $0xcb8] sm:$0xff]
    %v508 = vld [vmem:[#allocation2 + $0xcc0] sm:$0xff]
    %v509 = vld [vmem:[#allocation2 + $0xcc8] sm:$0xff]
    %v510 = vld [vmem:[#allocation2 + $0xcd0] sm:$0xff]
    %v511 = vld [vmem:[#allocation2 + $0xcd8] sm:$0xff]
    %v512 = vld [vmem:[#allocation2 + $0xce0] sm:$0xff]
    %v513 = vld [vmem:[#allocation2 + $0xce8] sm:$0xff]
    %v514 = vld [vmem:[#allocation2 + $0xcf0] sm:$0xff]
    %v515 = vld [vmem:[#allocation2 + $0xcf8] sm:$0xff]
    %v516 = vld [vmem:[#allocation2 + $0xd00] sm:$0xff]
    %v517 = vld [vmem:[#allocation2 + $0xd08] sm:$0xff]
    %v518 = vld [vmem:[#allocation2 + $0xd10] sm:$0xff]
    %v519 = vld [vmem:[#allocation2 + $0xd18] sm:$0xff]
    %v520 = vld [vmem:[#allocation2 + $0xd20] sm:$0xff]
    %v521 = vld [vmem:[#allocation2 + $0xd28] sm:$0xff]
    %v522 = vld [vmem:[#allocation2 + $0xd30] sm:$0xff]
    %v523 = vld [vmem:[#allocation2 + $0xd38] sm:$0xff]
    %v524 = vld [vmem:[#allocation2 + $0xd40] sm:$0xff]
    %v525 = vld [vmem:[#allocation2 + $0xd48] sm:$0xff]
    %v526 = vld [vmem:[#allocation2 + $0xd50] sm:$0xff]
    %v527 = vld [vmem:[#allocation2 + $0xd58] sm:$0xff]
    %v528 = vld [vmem:[#allocation2 + $0xd60] sm:$0xff]
    %v529 = vld [vmem:[#allocation2 + $0xd68] sm:$0xff]
    %v530 = vld [vmem:[#allocation2 + $0xd70] sm:$0xff]
    %v531 = vld [vmem:[#allocation2 + $0xd78] sm:$0xff]
    %v532 = vld [vmem:[#allocation2 + $0xd80] sm:$0xff]
    %v533 = vld [vmem:[#allocation2 + $0xd88] sm:$0xff]
    %v534 = vld [vmem:[#allocation2 + $0xd90] sm:$0xff]
    %v535 = vld [vmem:[#allocation2 + $0xd98] sm:$0xff]
    %v536 = vld [vmem:[#allocation2 + $0xda0] sm:$0xff]
    %v537 = vld [vmem:[#allocation2 + $0xda8] sm:$0xff]
    %v538 = vld [vmem:[#allocation2 + $0xdb0] sm:$0xff]
    %v539 = vld [vmem:[#allocation2 + $0xdb8] sm:$0xff]
    %v540 = vld [vmem:[#allocation2 + $0xdc0] sm:$0xff]
    %v541 = vld [vmem:[#allocation2 + $0xdc8] sm:$0xff]
    %v542 = vld [vmem:[#allocation2 + $0xdd0] sm:$0xff]
    %v543 = vld [vmem:[#allocation2 + $0xdd8] sm:$0xff]
    %v544 = vld [vmem:[#allocation2 + $0xde0] sm:$0xff]
    %v545 = vld [vmem:[#allocation2 + $0xde8] sm:$0xff]
    %v546 = vld [vmem:[#allocation2 + $0xdf0] sm:$0xff]
    %v547 = vld [vmem:[#allocation2 + $0xdf8] sm:$0xff]
    %v548 = vld [vmem:[#allocation2 + $0xe00] sm:$0xff]
    %v549 = vld [vmem:[#allocation2 + $0xe08] sm:$0xff]
    %v550 = vld [vmem:[#allocation2 + $0xe10] sm:$0xff]
    %v551 = vld [vmem:[#allocation2 + $0xe18] sm:$0xff]
    %v552 = vld [vmem:[#allocation2 + $0xe20] sm:$0xff]
    %v553 = vld [vmem:[#allocation2 + $0xe28] sm:$0xff]
    %v554 = vld [vmem:[#allocation2 + $0xe30] sm:$0xff]
    %v555 = vld [vmem:[#allocation2 + $0xe38] sm:$0xff]
    %v556 = vld [vmem:[#allocation2 + $0xe40] sm:$0xff]
    %v557 = vld [vmem:[#allocation2 + $0xe48] sm:$0xff]
    %v558 = vld [vmem:[#allocation2 + $0xe50] sm:$0xff]
    %v559 = vld [vmem:[#allocation2 + $0xe58] sm:$0xff]
    %v560 = vld [vmem:[#allocation2 + $0xe60] sm:$0xff]
    %v561 = vld [vmem:[#allocation2 + $0xe68] sm:$0xff]
    %v562 = vld [vmem:[#allocation2 + $0xe70] sm:$0xff]
    %v563 = vld [vmem:[#allocation2 + $0xe78] sm:$0xff]
    %v564 = vld [vmem:[#allocation2 + $0xe80] sm:$0xff]
    %v565 = vld [vmem:[#allocation2 + $0xe88] sm:$0xff]
    %v566 = vld [vmem:[#allocation2 + $0xe90] sm:$0xff]
    %v567 = vld [vmem:[#allocation2 + $0xe98] sm:$0xff]
    %v568 = vld [vmem:[#allocation2 + $0xea0] sm:$0xff]
    %v569 = vld [vmem:[#allocation2 + $0xea8] sm:$0xff]
    %v570 = vld [vmem:[#allocation2 + $0xeb0] sm:$0xff]
    %v571 = vld [vmem:[#allocation2 + $0xeb8] sm:$0xff]
    %v572 = vld [vmem:[#allocation2 + $0xec0] sm:$0xff]
    %v573 = vld [vmem:[#allocation2 + $0xec8] sm:$0xff]
    %v574 = vld [vmem:[#allocation2 + $0xed0] sm:$0xff]
    %v575 = vld [vmem:[#allocation2 + $0xed8] sm:$0xff]
    %v576 = vld [vmem:[#allocation2 + $0xee0] sm:$0xff]
    %v577 = vld [vmem:[#allocation2 + $0xee8] sm:$0xff]
    %v578 = vld [vmem:[#allocation2 + $0xef0] sm:$0xff]
    %v579 = vld [vmem:[#allocation2 + $0xef8] sm:$0xff]
    %v580 = vld [vmem:[#allocation2 + $0xf00] sm:$0xff]
    %v581 = vld [vmem:[#allocation2 + $0xf08] sm:$0xff]
    %v582 = vld [vmem:[#allocation2 + $0xf10] sm:$0xff]
    %v583 = vld [vmem:[#allocation2 + $0xf18] sm:$0xff]
    %v584 = vld [vmem:[#allocation2 + $0xf20] sm:$0xff]
    %v585 = vld [vmem:[#allocation2 + $0xf28] sm:$0xff]
    %v586 = vld [vmem:[#allocation2 + $0xf30] sm:$0xff]
    %v587 = vld [vmem:[#allocation2 + $0xf38] sm:$0xff]
    %v588 = vld [vmem:[#allocation2 + $0xf40] sm:$0xff]
    %v589 = vld [vmem:[#allocation2 + $0xf48] sm:$0xff]
    %v590 = vld [vmem:[#allocation2 + $0xf50] sm:$0xff]
    %v591 = vld [vmem:[#allocation2 + $0xf58] sm:$0xff]
    %v592 = vld [vmem:[#allocation2 + $0xf60] sm:$0xff]
    %v593 = vld [vmem:[#allocation2 + $0xf68] sm:$0xff]
    %v594 = vld [vmem:[#allocation2 + $0xf70] sm:$0xff]
    %v595 = vld [vmem:[#allocation2 + $0xf78] sm:$0xff]
    %v596 = vld [vmem:[#allocation2 + $0xf80] sm:$0xff]
    %v597 = vld [vmem:[#allocation2 + $0xf88] sm:$0xff]
    %v598 = vld [vmem:[#allocation2 + $0xf90] sm:$0xff]
    %v599 = vld [vmem:[#allocation2 + $0xf98] sm:$0xff]
    %v600 = vld [vmem:[#allocation2 + $0xfa0] sm:$0xff]
    %v601 = vld [vmem:[#allocation2 + $0xfa8] sm:$0xff]
    %v602 = vld [vmem:[#allocation2 + $0xfb0] sm:$0xff]
    %v603 = vld [vmem:[#allocation2 + $0xfb8] sm:$0xff]
    %v604 = vld [vmem:[#allocation2 + $0xfc0] sm:$0xff]
    %v605 = vld [vmem:[#allocation2 + $0xfc8] sm:$0xff]
    %v606 = vld [vmem:[#allocation2 + $0xfd0] sm:$0xff]
    %v607 = vld [vmem:[#allocation2 + $0xfd8] sm:$0xff]
    %v608 = vld [vmem:[#allocation2 + $0xfe0] sm:$0xff]
    %v609 = vld [vmem:[#allocation2 + $0xfe8] sm:$0xff]
    %v610 = vld [vmem:[#allocation2 + $0xff0] sm:$0xff]
    %v611 = vld [vmem:[#allocation2 + $0xff8] sm:$0xff]
    %v612 = vld [vmem:[#allocation4] sm:$0xf]
    %v614 = vperm.slane %v612, 0
    %v615 = vperm.slane %v612, 1
    %v616 = vperm.slane %v612, 2
    %v617 = vperm.slane %v612, 3
    %624 = vst [vmem:[#allocation1] ss:$4 sm:$0xff] %v98
    %s625 = scalar_lea.vmem [#allocation1], 32
    %626 = vst [vmem:[%s625] ss:$4 sm:$0xff] %v99
    %v627 = vld.sshfl [vmem:[#allocation1] sm:$0xff pattern:$0x73625140]
    %v628 = vld.sshfl [vmem:[#allocation1 + $0x8] sm:$0xff pattern:$0x73625140]
    %v629 = vld.sshfl [vmem:[#allocation1 + $0x10] sm:$0xff pattern:$0x73625140]
    %v630 = vld.sshfl [vmem:[#allocation1 + $0x18] sm:$0xff pattern:$0x73625140]
    %v631 = vld.sshfl [vmem:[#allocation1 + $0x20] sm:$0xff pattern:$0x73625140]
    %v632 = vld.sshfl [vmem:[#allocation1 + $0x28] sm:$0xff pattern:$0x73625140]
    %v633 = vld.sshfl [vmem:[#allocation1 + $0x30] sm:$0xff pattern:$0x73625140]
    %v634 = vld.sshfl [vmem:[#allocation1 + $0x38] sm:$0xff pattern:$0x73625140]
    %643 = vmatpush.msra.mxu0 %v160
    %644 = vmatpush.msra.mxu0 %v156
    %645 = vmatpush.msra.mxu0 %v152
    %646 = vmatpush.msra.mxu0 %v148
    %647 = vmatpush.msra.mxu0 %v144
    %648 = vmatpush.msra.mxu0 %v140
    %649 = vmatpush.msra.mxu0 %v136
    %650 = vmatpush.msra.mxu0 %v132
    %651 = vmatpush.msra.mxu0 %v128
    %652 = vmatpush.msra.mxu0 %v124
    %653 = vmatpush.msra.mxu0 %v120
    %654 = vmatpush.msra.mxu0 %v116
    %655 = vmatpush.msra.mxu0 %v112
    %656 = vmatpush.msra.mxu0 %v108
    %657 = vmatpush.msra.mxu0 %v104
    %658 = vmatpush.msra.mxu0 %v100
    %659 = vmatmul.f32.gmra.mxu0 %v627
    %v660 = vpop.f32.mrf.mxu0
    %v661 = vadd.f32 %v614, %v660
    %662 = vdwg.mxu0
    %663 = vmatpush.msra.mxu0 %v224
    %664 = vmatpush.msra.mxu0 %v220
    %665 = vmatpush.msra.mxu0 %v216
    %666 = vmatpush.msra.mxu0 %v212
    %667 = vmatpush.msra.mxu0 %v208
    %668 = vmatpush.msra.mxu0 %v204
    %669 = vmatpush.msra.mxu0 %v200
    %670 = vmatpush.msra.mxu0 %v196
    %671 = vmatpush.msra.mxu0 %v192
    %672 = vmatpush.msra.mxu0 %v188
    %673 = vmatpush.msra.mxu0 %v184
    %674 = vmatpush.msra.mxu0 %v180
    %675 = vmatpush.msra.mxu0 %v176
    %676 = vmatpush.msra.mxu0 %v172
    %677 = vmatpush.msra.mxu0 %v168
    %678 = vmatpush.msra.mxu0 %v164
    %679 = vmatmul.f32.gmra.mxu0 %v628
    %v680 = vpop.f32.mrf.mxu0
    %v681 = vadd.f32 %v661, %v680
    %682 = vdwg.mxu0
    %683 = vmatpush.msra.mxu0 %v288
    %684 = vmatpush.msra.mxu0 %v284
    %685 = vmatpush.msra.mxu0 %v280
    %686 = vmatpush.msra.mxu0 %v276
    %687 = vmatpush.msra.mxu0 %v272
    %688 = vmatpush.msra.mxu0 %v268
    %689 = vmatpush.msra.mxu0 %v264
    %690 = vmatpush.msra.mxu0 %v260
    %691 = vmatpush.msra.mxu0 %v256
    %692 = vmatpush.msra.mxu0 %v252
    %693 = vmatpush.msra.mxu0 %v248
    %694 = vmatpush.msra.mxu0 %v244
    %695 = vmatpush.msra.mxu0 %v240
    %696 = vmatpush.msra.mxu0 %v236
    %697 = vmatpush.msra.mxu0 %v232
    %698 = vmatpush.msra.mxu0 %v228
    %699 = vmatmul.f32.gmra.mxu0 %v629
    %v700 = vpop.f32.mrf.mxu0
    %v701 = vadd.f32 %v681, %v700
    %702 = vdwg.mxu0
    %703 = vmatpush.msra.mxu0 %v352
    %704 = vmatpush.msra.mxu0 %v348
    %705 = vmatpush.msra.mxu0 %v344
    %706 = vmatpush.msra.mxu0 %v340
    %707 = vmatpush.msra.mxu0 %v336
    %708 = vmatpush.msra.mxu0 %v332
    %709 = vmatpush.msra.mxu0 %v328
    %710 = vmatpush.msra.mxu0 %v324
    %711 = vmatpush.msra.mxu0 %v320
    %712 = vmatpush.msra.mxu0 %v316
    %713 = vmatpush.msra.mxu0 %v312
    %714 = vmatpush.msra.mxu0 %v308
    %715 = vmatpush.msra.mxu0 %v304
    %716 = vmatpush.msra.mxu0 %v300
    %717 = vmatpush.msra.mxu0 %v296
    %718 = vmatpush.msra.mxu0 %v292
    %719 = vmatmul.f32.gmra.mxu0 %v630
    %v720 = vpop.f32.mrf.mxu0
    %v721 = vadd.f32 %v701, %v720
    %722 = vdwg.mxu0
    %723 = vmatpush.msra.mxu0 %v416
    %724 = vmatpush.msra.mxu0 %v412
    %725 = vmatpush.msra.mxu0 %v408
    %726 = vmatpush.msra.mxu0 %v404
    %727 = vmatpush.msra.mxu0 %v400
    %728 = vmatpush.msra.mxu0 %v396
    %729 = vmatpush.msra.mxu0 %v392
    %730 = vmatpush.msra.mxu0 %v388
    %731 = vmatpush.msra.mxu0 %v384
    %732 = vmatpush.msra.mxu0 %v380
    %733 = vmatpush.msra.mxu0 %v376
    %734 = vmatpush.msra.mxu0 %v372
    %735 = vmatpush.msra.mxu0 %v368
    %736 = vmatpush.msra.mxu0 %v364
    %737 = vmatpush.msra.mxu0 %v360
    %738 = vmatpush.msra.mxu0 %v356
    %739 = vmatmul.f32.gmra.mxu0 %v631
    %v740 = vpop.f32.mrf.mxu0
    %v741 = vadd.f32 %v721, %v740
    %742 = vdwg.mxu0
    %743 = vmatpush.msra.mxu0 %v480
    %744 = vmatpush.msra.mxu0 %v476
    %745 = vmatpush.msra.mxu0 %v472
    %746 = vmatpush.msra.mxu0 %v468
    %747 = vmatpush.msra.mxu0 %v464
    %748 = vmatpush.msra.mxu0 %v460
    %749 = vmatpush.msra.mxu0 %v456
    %750 = vmatpush.msra.mxu0 %v452
    %751 = vmatpush.msra.mxu0 %v448
    %752 = vmatpush.msra.mxu0 %v444
    %753 = vmatpush.msra.mxu0 %v440
    %754 = vmatpush.msra.mxu0 %v436
    %755 = vmatpush.msra.mxu0 %v432
    %756 = vmatpush.msra.mxu0 %v428
    %757 = vmatpush.msra.mxu0 %v424
    %758 = vmatpush.msra.mxu0 %v420
    %759 = vmatmul.f32.gmra.mxu0 %v632
    %v760 = vpop.f32.mrf.mxu0
    %v761 = vadd.f32 %v741, %v760
    %762 = vdwg.mxu0
    %763 = vmatpush.msra.mxu0 %v544
    %764 = vmatpush.msra.mxu0 %v540
    %765 = vmatpush.msra.mxu0 %v536
    %766 = vmatpush.msra.mxu0 %v532
    %767 = vmatpush.msra.mxu0 %v528
    %768 = vmatpush.msra.mxu0 %v524
    %769 = vmatpush.msra.mxu0 %v520
    %770 = vmatpush.msra.mxu0 %v516
    %771 = vmatpush.msra.mxu0 %v512
    %772 = vmatpush.msra.mxu0 %v508
    %773 = vmatpush.msra.mxu0 %v504
    %774 = vmatpush.msra.mxu0 %v500
    %775 = vmatpush.msra.mxu0 %v496
    %776 = vmatpush.msra.mxu0 %v492
    %777 = vmatpush.msra.mxu0 %v488
    %778 = vmatpush.msra.mxu0 %v484
    %779 = vmatmul.f32.gmra.mxu0 %v633
    %v780 = vpop.f32.mrf.mxu0
    %v781 = vadd.f32 %v761, %v780
    %782 = vdwg.mxu0
    %783 = vmatpush.msra.mxu0 %v608
    %784 = vmatpush.msra.mxu0 %v604
    %785 = vmatpush.msra.mxu0 %v600
    %786 = vmatpush.msra.mxu0 %v596
    %787 = vmatpush.msra.mxu0 %v592
    %788 = vmatpush.msra.mxu0 %v588
    %789 = vmatpush.msra.mxu0 %v584
    %790 = vmatpush.msra.mxu0 %v580
    %791 = vmatpush.msra.mxu0 %v576
    %792 = vmatpush.msra.mxu0 %v572
    %793 = vmatpush.msra.mxu0 %v568
    %794 = vmatpush.msra.mxu0 %v564
    %795 = vmatpush.msra.mxu0 %v560
    %796 = vmatpush.msra.mxu0 %v556
    %797 = vmatpush.msra.mxu0 %v552
    %798 = vmatpush.msra.mxu0 %v548
    %799 = vmatmul.f32.gmra.mxu0 %v634
    %v800 = vpop.f32.mrf.mxu0
    %v801 = vadd.f32 %v781, %v800
    %802 = vdwg.mxu0
    %803 = vmatpush.msra.mxu0 %v161
    %804 = vmatpush.msra.mxu0 %v157
    %805 = vmatpush.msra.mxu0 %v153
    %806 = vmatpush.msra.mxu0 %v149
    %807 = vmatpush.msra.mxu0 %v145
    %808 = vmatpush.msra.mxu0 %v141
    %809 = vmatpush.msra.mxu0 %v137
    %810 = vmatpush.msra.mxu0 %v133
    %811 = vmatpush.msra.mxu0 %v129
    %812 = vmatpush.msra.mxu0 %v125
    %813 = vmatpush.msra.mxu0 %v121
    %814 = vmatpush.msra.mxu0 %v117
    %815 = vmatpush.msra.mxu0 %v113
    %816 = vmatpush.msra.mxu0 %v109
    %817 = vmatpush.msra.mxu0 %v105
    %818 = vmatpush.msra.mxu0 %v101
    %819 = vmatmul.f32.gmra.mxu0 %v627
    %v820 = vpop.f32.mrf.mxu0
    %v821 = vadd.f32 %v615, %v820
    %822 = vdwg.mxu0
    %823 = vmatpush.msra.mxu0 %v225
    %824 = vmatpush.msra.mxu0 %v221
    %825 = vmatpush.msra.mxu0 %v217
    %826 = vmatpush.msra.mxu0 %v213
    %827 = vmatpush.msra.mxu0 %v209
    %828 = vmatpush.msra.mxu0 %v205
    %829 = vmatpush.msra.mxu0 %v201
    %830 = vmatpush.msra.mxu0 %v197
    %831 = vmatpush.msra.mxu0 %v193
    %832 = vmatpush.msra.mxu0 %v189
    %833 = vmatpush.msra.mxu0 %v185
    %834 = vmatpush.msra.mxu0 %v181
    %835 = vmatpush.msra.mxu0 %v177
    %836 = vmatpush.msra.mxu0 %v173
    %837 = vmatpush.msra.mxu0 %v169
    %838 = vmatpush.msra.mxu0 %v165
    %839 = vmatmul.f32.gmra.mxu0 %v628
    %v840 = vpop.f32.mrf.mxu0
    %v841 = vadd.f32 %v821, %v840
    %842 = vdwg.mxu0
    %843 = vmatpush.msra.mxu0 %v289
    %844 = vmatpush.msra.mxu0 %v285
    %845 = vmatpush.msra.mxu0 %v281
    %846 = vmatpush.msra.mxu0 %v277
    %847 = vmatpush.msra.mxu0 %v273
    %848 = vmatpush.msra.mxu0 %v269
    %849 = vmatpush.msra.mxu0 %v265
    %850 = vmatpush.msra.mxu0 %v261
    %851 = vmatpush.msra.mxu0 %v257
    %852 = vmatpush.msra.mxu0 %v253
    %853 = vmatpush.msra.mxu0 %v249
    %854 = vmatpush.msra.mxu0 %v245
    %855 = vmatpush.msra.mxu0 %v241
    %856 = vmatpush.msra.mxu0 %v237
    %857 = vmatpush.msra.mxu0 %v233
    %858 = vmatpush.msra.mxu0 %v229
    %859 = vmatmul.f32.gmra.mxu0 %v629
    %v860 = vpop.f32.mrf.mxu0
    %v861 = vadd.f32 %v841, %v860
    %862 = vdwg.mxu0
    %863 = vmatpush.msra.mxu0 %v353
    %864 = vmatpush.msra.mxu0 %v349
    %865 = vmatpush.msra.mxu0 %v345
    %866 = vmatpush.msra.mxu0 %v341
    %867 = vmatpush.msra.mxu0 %v337
    %868 = vmatpush.msra.mxu0 %v333
    %869 = vmatpush.msra.mxu0 %v329
    %870 = vmatpush.msra.mxu0 %v325
    %871 = vmatpush.msra.mxu0 %v321
    %872 = vmatpush.msra.mxu0 %v317
    %873 = vmatpush.msra.mxu0 %v313
    %874 = vmatpush.msra.mxu0 %v309
    %875 = vmatpush.msra.mxu0 %v305
    %876 = vmatpush.msra.mxu0 %v301
    %877 = vmatpush.msra.mxu0 %v297
    %878 = vmatpush.msra.mxu0 %v293
    %879 = vmatmul.f32.gmra.mxu0 %v630
    %v880 = vpop.f32.mrf.mxu0
    %v881 = vadd.f32 %v861, %v880
    %882 = vdwg.mxu0
    %883 = vmatpush.msra.mxu0 %v417
    %884 = vmatpush.msra.mxu0 %v413
    %885 = vmatpush.msra.mxu0 %v409
    %886 = vmatpush.msra.mxu0 %v405
    %887 = vmatpush.msra.mxu0 %v401
    %888 = vmatpush.msra.mxu0 %v397
    %889 = vmatpush.msra.mxu0 %v393
    %890 = vmatpush.msra.mxu0 %v389
    %891 = vmatpush.msra.mxu0 %v385
    %892 = vmatpush.msra.mxu0 %v381
    %893 = vmatpush.msra.mxu0 %v377
    %894 = vmatpush.msra.mxu0 %v373
    %895 = vmatpush.msra.mxu0 %v369
    %896 = vmatpush.msra.mxu0 %v365
    %897 = vmatpush.msra.mxu0 %v361
    %898 = vmatpush.msra.mxu0 %v357
    %899 = vmatmul.f32.gmra.mxu0 %v631
    %v900 = vpop.f32.mrf.mxu0
    %v901 = vadd.f32 %v881, %v900
    %902 = vdwg.mxu0
    %903 = vmatpush.msra.mxu0 %v481
    %904 = vmatpush.msra.mxu0 %v477
    %905 = vmatpush.msra.mxu0 %v473
    %906 = vmatpush.msra.mxu0 %v469
    %907 = vmatpush.msra.mxu0 %v465
    %908 = vmatpush.msra.mxu0 %v461
    %909 = vmatpush.msra.mxu0 %v457
    %910 = vmatpush.msra.mxu0 %v453
    %911 = vmatpush.msra.mxu0 %v449
    %912 = vmatpush.msra.mxu0 %v445
    %913 = vmatpush.msra.mxu0 %v441
    %914 = vmatpush.msra.mxu0 %v437
    %915 = vmatpush.msra.mxu0 %v433
    %916 = vmatpush.msra.mxu0 %v429
    %917 = vmatpush.msra.mxu0 %v425
    %918 = vmatpush.msra.mxu0 %v421
    %919 = vmatmul.f32.gmra.mxu0 %v632
    %v920 = vpop.f32.mrf.mxu0
    %v921 = vadd.f32 %v901, %v920
    %922 = vdwg.mxu0
    %923 = vmatpush.msra.mxu0 %v545
    %924 = vmatpush.msra.mxu0 %v541
    %925 = vmatpush.msra.mxu0 %v537
    %926 = vmatpush.msra.mxu0 %v533
    %927 = vmatpush.msra.mxu0 %v529
    %928 = vmatpush.msra.mxu0 %v525
    %929 = vmatpush.msra.mxu0 %v521
    %930 = vmatpush.msra.mxu0 %v517
    %931 = vmatpush.msra.mxu0 %v513
    %932 = vmatpush.msra.mxu0 %v509
    %933 = vmatpush.msra.mxu0 %v505
    %934 = vmatpush.msra.mxu0 %v501
    %935 = vmatpush.msra.mxu0 %v497
    %936 = vmatpush.msra.mxu0 %v493
    %937 = vmatpush.msra.mxu0 %v489
    %938 = vmatpush.msra.mxu0 %v485
    %939 = vmatmul.f32.gmra.mxu0 %v633
    %v940 = vpop.f32.mrf.mxu0
    %v941 = vadd.f32 %v921, %v940
    %942 = vdwg.mxu0
    %943 = vmatpush.msra.mxu0 %v609
    %944 = vmatpush.msra.mxu0 %v605
    %945 = vmatpush.msra.mxu0 %v601
    %946 = vmatpush.msra.mxu0 %v597
    %947 = vmatpush.msra.mxu0 %v593
    %948 = vmatpush.msra.mxu0 %v589
    %949 = vmatpush.msra.mxu0 %v585
    %950 = vmatpush.msra.mxu0 %v581
    %951 = vmatpush.msra.mxu0 %v577
    %952 = vmatpush.msra.mxu0 %v573
    %953 = vmatpush.msra.mxu0 %v569
    %954 = vmatpush.msra.mxu0 %v565
    %955 = vmatpush.msra.mxu0 %v561
    %956 = vmatpush.msra.mxu0 %v557
    %957 = vmatpush.msra.mxu0 %v553
    %958 = vmatpush.msra.mxu0 %v549
    %959 = vmatmul.f32.gmra.mxu0 %v634
    %v960 = vpop.f32.mrf.mxu0
    %v961 = vadd.f32 %v941, %v960
    %962 = vdwg.mxu0
    %963 = vmatpush.msra.mxu0 %v162
    %964 = vmatpush.msra.mxu0 %v158
    %965 = vmatpush.msra.mxu0 %v154
    %966 = vmatpush.msra.mxu0 %v150
    %967 = vmatpush.msra.mxu0 %v146
    %968 = vmatpush.msra.mxu0 %v142
    %969 = vmatpush.msra.mxu0 %v138
    %970 = vmatpush.msra.mxu0 %v134
    %971 = vmatpush.msra.mxu0 %v130
    %972 = vmatpush.msra.mxu0 %v126
    %973 = vmatpush.msra.mxu0 %v122
    %974 = vmatpush.msra.mxu0 %v118
    %975 = vmatpush.msra.mxu0 %v114
    %976 = vmatpush.msra.mxu0 %v110
    %977 = vmatpush.msra.mxu0 %v106
    %978 = vmatpush.msra.mxu0 %v102
    %979 = vmatmul.f32.gmra.mxu0 %v627
    %v980 = vpop.f32.mrf.mxu0
    %v981 = vadd.f32 %v616, %v980
    %982 = vdwg.mxu0
    %983 = vmatpush.msra.mxu0 %v226
    %984 = vmatpush.msra.mxu0 %v222
    %985 = vmatpush.msra.mxu0 %v218
    %986 = vmatpush.msra.mxu0 %v214
    %987 = vmatpush.msra.mxu0 %v210
    %988 = vmatpush.msra.mxu0 %v206
    %989 = vmatpush.msra.mxu0 %v202
    %990 = vmatpush.msra.mxu0 %v198
    %991 = vmatpush.msra.mxu0 %v194
    %992 = vmatpush.msra.mxu0 %v190
    %993 = vmatpush.msra.mxu0 %v186
    %994 = vmatpush.msra.mxu0 %v182
    %995 = vmatpush.msra.mxu0 %v178
    %996 = vmatpush.msra.mxu0 %v174
    %997 = vmatpush.msra.mxu0 %v170
    %998 = vmatpush.msra.mxu0 %v166
    %999 = vmatmul.f32.gmra.mxu0 %v628
    %v1000 = vpop.f32.mrf.mxu0
    %v1001 = vadd.f32 %v981, %v1000
    %1002 = vdwg.mxu0
    %1003 = vmatpush.msra.mxu0 %v290
    %1004 = vmatpush.msra.mxu0 %v286
    %1005 = vmatpush.msra.mxu0 %v282
    %1006 = vmatpush.msra.mxu0 %v278
    %1007 = vmatpush.msra.mxu0 %v274
    %1008 = vmatpush.msra.mxu0 %v270
    %1009 = vmatpush.msra.mxu0 %v266
    %1010 = vmatpush.msra.mxu0 %v262
    %1011 = vmatpush.msra.mxu0 %v258
    %1012 = vmatpush.msra.mxu0 %v254
    %1013 = vmatpush.msra.mxu0 %v250
    %1014 = vmatpush.msra.mxu0 %v246
    %1015 = vmatpush.msra.mxu0 %v242
    %1016 = vmatpush.msra.mxu0 %v238
    %1017 = vmatpush.msra.mxu0 %v234
    %1018 = vmatpush.msra.mxu0 %v230
    %1019 = vmatmul.f32.gmra.mxu0 %v629
    %v1020 = vpop.f32.mrf.mxu0
    %v1021 = vadd.f32 %v1001, %v1020
    %1022 = vdwg.mxu0
    %1023 = vmatpush.msra.mxu0 %v354
    %1024 = vmatpush.msra.mxu0 %v350
    %1025 = vmatpush.msra.mxu0 %v346
    %1026 = vmatpush.msra.mxu0 %v342
    %1027 = vmatpush.msra.mxu0 %v338
    %1028 = vmatpush.msra.mxu0 %v334
    %1029 = vmatpush.msra.mxu0 %v330
    %1030 = vmatpush.msra.mxu0 %v326
    %1031 = vmatpush.msra.mxu0 %v322
    %1032 = vmatpush.msra.mxu0 %v318
    %1033 = vmatpush.msra.mxu0 %v314
    %1034 = vmatpush.msra.mxu0 %v310
    %1035 = vmatpush.msra.mxu0 %v306
    %1036 = vmatpush.msra.mxu0 %v302
    %1037 = vmatpush.msra.mxu0 %v298
    %1038 = vmatpush.msra.mxu0 %v294
    %1039 = vmatmul.f32.gmra.mxu0 %v630
    %v1040 = vpop.f32.mrf.mxu0
    %v1041 = vadd.f32 %v1021, %v1040
    %1042 = vdwg.mxu0
    %1043 = vmatpush.msra.mxu0 %v418
    %1044 = vmatpush.msra.mxu0 %v414
    %1045 = vmatpush.msra.mxu0 %v410
    %1046 = vmatpush.msra.mxu0 %v406
    %1047 = vmatpush.msra.mxu0 %v402
    %1048 = vmatpush.msra.mxu0 %v398
    %1049 = vmatpush.msra.mxu0 %v394
    %1050 = vmatpush.msra.mxu0 %v390
    %1051 = vmatpush.msra.mxu0 %v386
    %1052 = vmatpush.msra.mxu0 %v382
    %1053 = vmatpush.msra.mxu0 %v378
    %1054 = vmatpush.msra.mxu0 %v374
    %1055 = vmatpush.msra.mxu0 %v370
    %1056 = vmatpush.msra.mxu0 %v366
    %1057 = vmatpush.msra.mxu0 %v362
    %1058 = vmatpush.msra.mxu0 %v358
    %1059 = vmatmul.f32.gmra.mxu0 %v631
    %v1060 = vpop.f32.mrf.mxu0
    %v1061 = vadd.f32 %v1041, %v1060
    %1062 = vdwg.mxu0
    %1063 = vmatpush.msra.mxu0 %v482
    %1064 = vmatpush.msra.mxu0 %v478
    %1065 = vmatpush.msra.mxu0 %v474
    %1066 = vmatpush.msra.mxu0 %v470
    %1067 = vmatpush.msra.mxu0 %v466
    %1068 = vmatpush.msra.mxu0 %v462
    %1069 = vmatpush.msra.mxu0 %v458
    %1070 = vmatpush.msra.mxu0 %v454
    %1071 = vmatpush.msra.mxu0 %v450
    %1072 = vmatpush.msra.mxu0 %v446
    %1073 = vmatpush.msra.mxu0 %v442
    %1074 = vmatpush.msra.mxu0 %v438
    %1075 = vmatpush.msra.mxu0 %v434
    %1076 = vmatpush.msra.mxu0 %v430
    %1077 = vmatpush.msra.mxu0 %v426
    %1078 = vmatpush.msra.mxu0 %v422
    %1079 = vmatmul.f32.gmra.mxu0 %v632
    %v1080 = vpop.f32.mrf.mxu0
    %v1081 = vadd.f32 %v1061, %v1080
    %1082 = vdwg.mxu0
    %1083 = vmatpush.msra.mxu0 %v546
    %1084 = vmatpush.msra.mxu0 %v542
    %1085 = vmatpush.msra.mxu0 %v538
    %1086 = vmatpush.msra.mxu0 %v534
    %1087 = vmatpush.msra.mxu0 %v530
    %1088 = vmatpush.msra.mxu0 %v526
    %1089 = vmatpush.msra.mxu0 %v522
    %1090 = vmatpush.msra.mxu0 %v518
    %1091 = vmatpush.msra.mxu0 %v514
    %1092 = vmatpush.msra.mxu0 %v510
    %1093 = vmatpush.msra.mxu0 %v506
    %1094 = vmatpush.msra.mxu0 %v502
    %1095 = vmatpush.msra.mxu0 %v498
    %1096 = vmatpush.msra.mxu0 %v494
    %1097 = vmatpush.msra.mxu0 %v490
    %1098 = vmatpush.msra.mxu0 %v486
    %1099 = vmatmul.f32.gmra.mxu0 %v633
    %v1100 = vpop.f32.mrf.mxu0
    %v1101 = vadd.f32 %v1081, %v1100
    %1102 = vdwg.mxu0
    %1103 = vmatpush.msra.mxu0 %v610
    %1104 = vmatpush.msra.mxu0 %v606
    %1105 = vmatpush.msra.mxu0 %v602
    %1106 = vmatpush.msra.mxu0 %v598
    %1107 = vmatpush.msra.mxu0 %v594
    %1108 = vmatpush.msra.mxu0 %v590
    %1109 = vmatpush.msra.mxu0 %v586
    %1110 = vmatpush.msra.mxu0 %v582
    %1111 = vmatpush.msra.mxu0 %v578
    %1112 = vmatpush.msra.mxu0 %v574
    %1113 = vmatpush.msra.mxu0 %v570
    %1114 = vmatpush.msra.mxu0 %v566
    %1115 = vmatpush.msra.mxu0 %v562
    %1116 = vmatpush.msra.mxu0 %v558
    %1117 = vmatpush.msra.mxu0 %v554
    %1118 = vmatpush.msra.mxu0 %v550
    %1119 = vmatmul.f32.gmra.mxu0 %v634
    %v1120 = vpop.f32.mrf.mxu0
    %v1121 = vadd.f32 %v1101, %v1120
    %1122 = vdwg.mxu0
    %1123 = vmatpush.msra.mxu0 %v163
    %1124 = vmatpush.msra.mxu0 %v159
    %1125 = vmatpush.msra.mxu0 %v155
    %1126 = vmatpush.msra.mxu0 %v151
    %1127 = vmatpush.msra.mxu0 %v147
    %1128 = vmatpush.msra.mxu0 %v143
    %1129 = vmatpush.msra.mxu0 %v139
    %1130 = vmatpush.msra.mxu0 %v135
    %1131 = vmatpush.msra.mxu0 %v131
    %1132 = vmatpush.msra.mxu0 %v127
    %1133 = vmatpush.msra.mxu0 %v123
    %1134 = vmatpush.msra.mxu0 %v119
    %1135 = vmatpush.msra.mxu0 %v115
    %1136 = vmatpush.msra.mxu0 %v111
    %1137 = vmatpush.msra.mxu0 %v107
    %1138 = vmatpush.msra.mxu0 %v103
    %1139 = vmatmul.f32.gmra.mxu0 %v627
    %v1140 = vpop.f32.mrf.mxu0
    %v1141 = vadd.f32 %v617, %v1140
    %1142 = vdwg.mxu0
    %1143 = vmatpush.msra.mxu0 %v227
    %1144 = vmatpush.msra.mxu0 %v223
    %1145 = vmatpush.msra.mxu0 %v219
    %1146 = vmatpush.msra.mxu0 %v215
    %1147 = vmatpush.msra.mxu0 %v211
    %1148 = vmatpush.msra.mxu0 %v207
    %1149 = vmatpush.msra.mxu0 %v203
    %1150 = vmatpush.msra.mxu0 %v199
    %1151 = vmatpush.msra.mxu0 %v195
    %1152 = vmatpush.msra.mxu0 %v191
    %1153 = vmatpush.msra.mxu0 %v187
    %1154 = vmatpush.msra.mxu0 %v183
    %1155 = vmatpush.msra.mxu0 %v179
    %1156 = vmatpush.msra.mxu0 %v175
    %1157 = vmatpush.msra.mxu0 %v171
    %1158 = vmatpush.msra.mxu0 %v167
    %1159 = vmatmul.f32.gmra.mxu0 %v628
    %v1160 = vpop.f32.mrf.mxu0
    %v1161 = vadd.f32 %v1141, %v1160
    %1162 = vdwg.mxu0
    %1163 = vmatpush.msra.mxu0 %v291
    %1164 = vmatpush.msra.mxu0 %v287
    %1165 = vmatpush.msra.mxu0 %v283
    %1166 = vmatpush.msra.mxu0 %v279
    %1167 = vmatpush.msra.mxu0 %v275
    %1168 = vmatpush.msra.mxu0 %v271
    %1169 = vmatpush.msra.mxu0 %v267
    %1170 = vmatpush.msra.mxu0 %v263
    %1171 = vmatpush.msra.mxu0 %v259
    %1172 = vmatpush.msra.mxu0 %v255
    %1173 = vmatpush.msra.mxu0 %v251
    %1174 = vmatpush.msra.mxu0 %v247
    %1175 = vmatpush.msra.mxu0 %v243
    %1176 = vmatpush.msra.mxu0 %v239
    %1177 = vmatpush.msra.mxu0 %v235
    %1178 = vmatpush.msra.mxu0 %v231
    %1179 = vmatmul.f32.gmra.mxu0 %v629
    %v1180 = vpop.f32.mrf.mxu0
    %v1181 = vadd.f32 %v1161, %v1180
    %1182 = vdwg.mxu0
    %1183 = vmatpush.msra.mxu0 %v355
    %1184 = vmatpush.msra.mxu0 %v351
    %1185 = vmatpush.msra.mxu0 %v347
    %1186 = vmatpush.msra.mxu0 %v343
    %1187 = vmatpush.msra.mxu0 %v339
    %1188 = vmatpush.msra.mxu0 %v335
    %1189 = vmatpush.msra.mxu0 %v331
    %1190 = vmatpush.msra.mxu0 %v327
    %1191 = vmatpush.msra.mxu0 %v323
    %1192 = vmatpush.msra.mxu0 %v319
    %1193 = vmatpush.msra.mxu0 %v315
    %1194 = vmatpush.msra.mxu0 %v311
    %1195 = vmatpush.msra.mxu0 %v307
    %1196 = vmatpush.msra.mxu0 %v303
    %1197 = vmatpush.msra.mxu0 %v299
    %1198 = vmatpush.msra.mxu0 %v295
    %1199 = vmatmul.f32.gmra.mxu0 %v630
    %v1200 = vpop.f32.mrf.mxu0
    %v1201 = vadd.f32 %v1181, %v1200
    %1202 = vdwg.mxu0
    %1203 = vmatpush.msra.mxu0 %v419
    %1204 = vmatpush.msra.mxu0 %v415
    %1205 = vmatpush.msra.mxu0 %v411
    %1206 = vmatpush.msra.mxu0 %v407
    %1207 = vmatpush.msra.mxu0 %v403
    %1208 = vmatpush.msra.mxu0 %v399
    %1209 = vmatpush.msra.mxu0 %v395
    %1210 = vmatpush.msra.mxu0 %v391
    %1211 = vmatpush.msra.mxu0 %v387
    %1212 = vmatpush.msra.mxu0 %v383
    %1213 = vmatpush.msra.mxu0 %v379
    %1214 = vmatpush.msra.mxu0 %v375
    %1215 = vmatpush.msra.mxu0 %v371
    %1216 = vmatpush.msra.mxu0 %v367
    %1217 = vmatpush.msra.mxu0 %v363
    %1218 = vmatpush.msra.mxu0 %v359
    %1219 = vmatmul.f32.gmra.mxu0 %v631
    %v1220 = vpop.f32.mrf.mxu0
    %v1221 = vadd.f32 %v1201, %v1220
    %1222 = vdwg.mxu0
    %1223 = vmatpush.msra.mxu0 %v483
    %1224 = vmatpush.msra.mxu0 %v479
    %1225 = vmatpush.msra.mxu0 %v475
    %1226 = vmatpush.msra.mxu0 %v471
    %1227 = vmatpush.msra.mxu0 %v467
    %1228 = vmatpush.msra.mxu0 %v463
    %1229 = vmatpush.msra.mxu0 %v459
    %1230 = vmatpush.msra.mxu0 %v455
    %1231 = vmatpush.msra.mxu0 %v451
    %1232 = vmatpush.msra.mxu0 %v447
    %1233 = vmatpush.msra.mxu0 %v443
    %1234 = vmatpush.msra.mxu0 %v439
    %1235 = vmatpush.msra.mxu0 %v435
    %1236 = vmatpush.msra.mxu0 %v431
    %1237 = vmatpush.msra.mxu0 %v427
    %1238 = vmatpush.msra.mxu0 %v423
    %1239 = vmatmul.f32.gmra.mxu0 %v632
    %v1240 = vpop.f32.mrf.mxu0
    %v1241 = vadd.f32 %v1221, %v1240
    %1242 = vdwg.mxu0
    %1243 = vmatpush.msra.mxu0 %v547
    %1244 = vmatpush.msra.mxu0 %v543
    %1245 = vmatpush.msra.mxu0 %v539
    %1246 = vmatpush.msra.mxu0 %v535
    %1247 = vmatpush.msra.mxu0 %v531
    %1248 = vmatpush.msra.mxu0 %v527
    %1249 = vmatpush.msra.mxu0 %v523
    %1250 = vmatpush.msra.mxu0 %v519
    %1251 = vmatpush.msra.mxu0 %v515
    %1252 = vmatpush.msra.mxu0 %v511
    %1253 = vmatpush.msra.mxu0 %v507
    %1254 = vmatpush.msra.mxu0 %v503
    %1255 = vmatpush.msra.mxu0 %v499
    %1256 = vmatpush.msra.mxu0 %v495
    %1257 = vmatpush.msra.mxu0 %v491
    %1258 = vmatpush.msra.mxu0 %v487
    %1259 = vmatmul.f32.gmra.mxu0 %v633
    %v1260 = vpop.f32.mrf.mxu0
    %v1261 = vadd.f32 %v1241, %v1260
    %1262 = vdwg.mxu0
    %1263 = vmatpush.msra.mxu0 %v611
    %1264 = vmatpush.msra.mxu0 %v607
    %1265 = vmatpush.msra.mxu0 %v603
    %1266 = vmatpush.msra.mxu0 %v599
    %1267 = vmatpush.msra.mxu0 %v595
    %1268 = vmatpush.msra.mxu0 %v591
    %1269 = vmatpush.msra.mxu0 %v587
    %1270 = vmatpush.msra.mxu0 %v583
    %1271 = vmatpush.msra.mxu0 %v579
    %1272 = vmatpush.msra.mxu0 %v575
    %1273 = vmatpush.msra.mxu0 %v571
    %1274 = vmatpush.msra.mxu0 %v567
    %1275 = vmatpush.msra.mxu0 %v563
    %1276 = vmatpush.msra.mxu0 %v559
    %1277 = vmatpush.msra.mxu0 %v555
    %1278 = vmatpush.msra.mxu0 %v551
    %1279 = vmatmul.f32.gmra.mxu0 %v634
    %v1280 = vpop.f32.mrf.mxu0
    %v1281 = vadd.f32 %v1261, %v1280
    %1282 = vdwg.mxu0
    %v1283 = vmax.f32 %v801, 0.0
    %v1284 = vmax.f32 %v961, 0.0
    %v1285 = vmax.f32 %v1121, 0.0
    %v1286 = vmax.f32 %v1281, 0.0
    %v1287 = vld [vmem:[#allocation6] sm:$0xff]
    %v1288 = vld [vmem:[#allocation6 + $0x8] sm:$0xff]
    %v1289 = vld [vmem:[#allocation6 + $0x10] sm:$0xff]
    %v1290 = vld [vmem:[#allocation6 + $0x18] sm:$0xff]
    %v1291 = vld [vmem:[#allocation6 + $0x20] sm:$0xff]
    %v1292 = vld [vmem:[#allocation6 + $0x28] sm:$0xff]
    %v1293 = vld [vmem:[#allocation6 + $0x30] sm:$0xff]
    %v1294 = vld [vmem:[#allocation6 + $0x38] sm:$0xff]
    %v1295 = vld [vmem:[#allocation6 + $0x40] sm:$0xff]
    %v1296 = vld [vmem:[#allocation6 + $0x48] sm:$0xff]
    %v1297 = vld [vmem:[#allocation6 + $0x50] sm:$0xff]
    %v1298 = vld [vmem:[#allocation6 + $0x58] sm:$0xff]
    %v1299 = vld [vmem:[#allocation6 + $0x60] sm:$0xff]
    %v1300 = vld [vmem:[#allocation6 + $0x68] sm:$0xff]
    %v1301 = vld [vmem:[#allocation6 + $0x70] sm:$0xff]
    %v1302 = vld [vmem:[#allocation6 + $0x78] sm:$0xff]
    %v1303 = vld [vmem:[#allocation6 + $0x80] sm:$0xff]
    %v1304 = vld [vmem:[#allocation6 + $0x88] sm:$0xff]
    %v1305 = vld [vmem:[#allocation6 + $0x90] sm:$0xff]
    %v1306 = vld [vmem:[#allocation6 + $0x98] sm:$0xff]
    %v1307 = vld [vmem:[#allocation6 + $0xa0] sm:$0xff]
    %v1308 = vld [vmem:[#allocation6 + $0xa8] sm:$0xff]
    %v1309 = vld [vmem:[#allocation6 + $0xb0] sm:$0xff]
    %v1310 = vld [vmem:[#allocation6 + $0xb8] sm:$0xff]
    %v1311 = vld [vmem:[#allocation6 + $0xc0] sm:$0xff]
    %v1312 = vld [vmem:[#allocation6 + $0xc8] sm:$0xff]
    %v1313 = vld [vmem:[#allocation6 + $0xd0] sm:$0xff]
    %v1314 = vld [vmem:[#allocation6 + $0xd8] sm:$0xff]
    %v1315 = vld [vmem:[#allocation6 + $0xe0] sm:$0xff]
    %v1316 = vld [vmem:[#allocation6 + $0xe8] sm:$0xff]
    %v1317 = vld [vmem:[#allocation6 + $0xf0] sm:$0xff]
    %v1318 = vld [vmem:[#allocation6 + $0xf8] sm:$0xff]
    %v1319 = vld [vmem:[#allocation6 + $0x100] sm:$0xff]
    %v1320 = vld [vmem:[#allocation6 + $0x108] sm:$0xff]
    %v1321 = vld [vmem:[#allocation6 + $0x110] sm:$0xff]
    %v1322 = vld [vmem:[#allocation6 + $0x118] sm:$0xff]
    %v1323 = vld [vmem:[#allocation6 + $0x120] sm:$0xff]
    %v1324 = vld [vmem:[#allocation6 + $0x128] sm:$0xff]
    %v1325 = vld [vmem:[#allocation6 + $0x130] sm:$0xff]
    %v1326 = vld [vmem:[#allocation6 + $0x138] sm:$0xff]
    %v1327 = vld [vmem:[#allocation6 + $0x140] sm:$0xff]
    %v1328 = vld [vmem:[#allocation6 + $0x148] sm:$0xff]
    %v1329 = vld [vmem:[#allocation6 + $0x150] sm:$0xff]
    %v1330 = vld [vmem:[#allocation6 + $0x158] sm:$0xff]
    %v1331 = vld [vmem:[#allocation6 + $0x160] sm:$0xff]
    %v1332 = vld [vmem:[#allocation6 + $0x168] sm:$0xff]
    %v1333 = vld [vmem:[#allocation6 + $0x170] sm:$0xff]
    %v1334 = vld [vmem:[#allocation6 + $0x178] sm:$0xff]
    %v1335 = vld [vmem:[#allocation6 + $0x180] sm:$0xff]
    %v1336 = vld [vmem:[#allocation6 + $0x188] sm:$0xff]
    %v1337 = vld [vmem:[#allocation6 + $0x190] sm:$0xff]
    %v1338 = vld [vmem:[#allocation6 + $0x198] sm:$0xff]
    %v1339 = vld [vmem:[#allocation6 + $0x1a0] sm:$0xff]
    %v1340 = vld [vmem:[#allocation6 + $0x1a8] sm:$0xff]
    %v1341 = vld [vmem:[#allocation6 + $0x1b0] sm:$0xff]
    %v1342 = vld [vmem:[#allocation6 + $0x1b8] sm:$0xff]
    %v1343 = vld [vmem:[#allocation6 + $0x1c0] sm:$0xff]
    %v1344 = vld [vmem:[#allocation6 + $0x1c8] sm:$0xff]
    %v1345 = vld [vmem:[#allocation6 + $0x1d0] sm:$0xff]
    %v1346 = vld [vmem:[#allocation6 + $0x1d8] sm:$0xff]
    %v1347 = vld [vmem:[#allocation6 + $0x1e0] sm:$0xff]
    %v1348 = vld [vmem:[#allocation6 + $0x1e8] sm:$0xff]
    %v1349 = vld [vmem:[#allocation6 + $0x1f0] sm:$0xff]
    %v1350 = vld [vmem:[#allocation6 + $0x1f8] sm:$0xff]
    %v1351 = vld [vmem:[#allocation6 + $0x200] sm:$0xff]
    %v1352 = vld [vmem:[#allocation6 + $0x208] sm:$0xff]
    %v1353 = vld [vmem:[#allocation6 + $0x210] sm:$0xff]
    %v1354 = vld [vmem:[#allocation6 + $0x218] sm:$0xff]
    %v1355 = vld [vmem:[#allocation6 + $0x220] sm:$0xff]
    %v1356 = vld [vmem:[#allocation6 + $0x228] sm:$0xff]
    %v1357 = vld [vmem:[#allocation6 + $0x230] sm:$0xff]
    %v1358 = vld [vmem:[#allocation6 + $0x238] sm:$0xff]
    %v1359 = vld [vmem:[#allocation6 + $0x240] sm:$0xff]
    %v1360 = vld [vmem:[#allocation6 + $0x248] sm:$0xff]
    %v1361 = vld [vmem:[#allocation6 + $0x250] sm:$0xff]
    %v1362 = vld [vmem:[#allocation6 + $0x258] sm:$0xff]
    %v1363 = vld [vmem:[#allocation6 + $0x260] sm:$0xff]
    %v1364 = vld [vmem:[#allocation6 + $0x268] sm:$0xff]
    %v1365 = vld [vmem:[#allocation6 + $0x270] sm:$0xff]
    %v1366 = vld [vmem:[#allocation6 + $0x278] sm:$0xff]
    %v1367 = vld [vmem:[#allocation6 + $0x280] sm:$0xff]
    %v1368 = vld [vmem:[#allocation6 + $0x288] sm:$0xff]
    %v1369 = vld [vmem:[#allocation6 + $0x290] sm:$0xff]
    %v1370 = vld [vmem:[#allocation6 + $0x298] sm:$0xff]
    %v1371 = vld [vmem:[#allocation6 + $0x2a0] sm:$0xff]
    %v1372 = vld [vmem:[#allocation6 + $0x2a8] sm:$0xff]
    %v1373 = vld [vmem:[#allocation6 + $0x2b0] sm:$0xff]
    %v1374 = vld [vmem:[#allocation6 + $0x2b8] sm:$0xff]
    %v1375 = vld [vmem:[#allocation6 + $0x2c0] sm:$0xff]
    %v1376 = vld [vmem:[#allocation6 + $0x2c8] sm:$0xff]
    %v1377 = vld [vmem:[#allocation6 + $0x2d0] sm:$0xff]
    %v1378 = vld [vmem:[#allocation6 + $0x2d8] sm:$0xff]
    %v1379 = vld [vmem:[#allocation6 + $0x2e0] sm:$0xff]
    %v1380 = vld [vmem:[#allocation6 + $0x2e8] sm:$0xff]
    %v1381 = vld [vmem:[#allocation6 + $0x2f0] sm:$0xff]
    %v1382 = vld [vmem:[#allocation6 + $0x2f8] sm:$0xff]
    %v1383 = vld [vmem:[#allocation6 + $0x300] sm:$0xff]
    %v1384 = vld [vmem:[#allocation6 + $0x308] sm:$0xff]
    %v1385 = vld [vmem:[#allocation6 + $0x310] sm:$0xff]
    %v1386 = vld [vmem:[#allocation6 + $0x318] sm:$0xff]
    %v1387 = vld [vmem:[#allocation6 + $0x320] sm:$0xff]
    %v1388 = vld [vmem:[#allocation6 + $0x328] sm:$0xff]
    %v1389 = vld [vmem:[#allocation6 + $0x330] sm:$0xff]
    %v1390 = vld [vmem:[#allocation6 + $0x338] sm:$0xff]
    %v1391 = vld [vmem:[#allocation6 + $0x340] sm:$0xff]
    %v1392 = vld [vmem:[#allocation6 + $0x348] sm:$0xff]
    %v1393 = vld [vmem:[#allocation6 + $0x350] sm:$0xff]
    %v1394 = vld [vmem:[#allocation6 + $0x358] sm:$0xff]
    %v1395 = vld [vmem:[#allocation6 + $0x360] sm:$0xff]
    %v1396 = vld [vmem:[#allocation6 + $0x368] sm:$0xff]
    %v1397 = vld [vmem:[#allocation6 + $0x370] sm:$0xff]
    %v1398 = vld [vmem:[#allocation6 + $0x378] sm:$0xff]
    %v1399 = vld [vmem:[#allocation6 + $0x380] sm:$0xff]
    %v1400 = vld [vmem:[#allocation6 + $0x388] sm:$0xff]
    %v1401 = vld [vmem:[#allocation6 + $0x390] sm:$0xff]
    %v1402 = vld [vmem:[#allocation6 + $0x398] sm:$0xff]
    %v1403 = vld [vmem:[#allocation6 + $0x3a0] sm:$0xff]
    %v1404 = vld [vmem:[#allocation6 + $0x3a8] sm:$0xff]
    %v1405 = vld [vmem:[#allocation6 + $0x3b0] sm:$0xff]
    %v1406 = vld [vmem:[#allocation6 + $0x3b8] sm:$0xff]
    %v1407 = vld [vmem:[#allocation6 + $0x3c0] sm:$0xff]
    %v1408 = vld [vmem:[#allocation6 + $0x3c8] sm:$0xff]
    %v1409 = vld [vmem:[#allocation6 + $0x3d0] sm:$0xff]
    %v1410 = vld [vmem:[#allocation6 + $0x3d8] sm:$0xff]
    %v1411 = vld [vmem:[#allocation6 + $0x3e0] sm:$0xff]
    %v1412 = vld [vmem:[#allocation6 + $0x3e8] sm:$0xff]
    %v1413 = vld [vmem:[#allocation6 + $0x3f0] sm:$0xff]
    %v1414 = vld [vmem:[#allocation6 + $0x3f8] sm:$0xff]
    %v1415 = vld [vmem:[#allocation7] sm:$0x3]
    %v1417 = vperm.slane %v1415, 0
    %v1418 = vperm.slane %v1415, 1
    %1421 = vmatpush.msra.mxu0 %v1317
    %1422 = vmatpush.msra.mxu0 %v1315
    %1423 = vmatpush.msra.mxu0 %v1313
    %1424 = vmatpush.msra.mxu0 %v1311
    %1425 = vmatpush.msra.mxu0 %v1309
    %1426 = vmatpush.msra.mxu0 %v1307
    %1427 = vmatpush.msra.mxu0 %v1305
    %1428 = vmatpush.msra.mxu0 %v1303
    %1429 = vmatpush.msra.mxu0 %v1301
    %1430 = vmatpush.msra.mxu0 %v1299
    %1431 = vmatpush.msra.mxu0 %v1297
    %1432 = vmatpush.msra.mxu0 %v1295
    %1433 = vmatpush.msra.mxu0 %v1293
    %1434 = vmatpush.msra.mxu0 %v1291
    %1435 = vmatpush.msra.mxu0 %v1289
    %1436 = vmatpush.msra.mxu0 %v1287
    %1437 = vmatmul.f32.gmra.mxu0 %v1283
    %v1438 = vpop.f32.mrf.mxu0
    %v1439 = vadd.f32 %v1417, %v1438
    %1440 = vdwg.mxu0
    %1441 = vmatpush.msra.mxu0 %v1349
    %1442 = vmatpush.msra.mxu0 %v1347
    %1443 = vmatpush.msra.mxu0 %v1345
    %1444 = vmatpush.msra.mxu0 %v1343
    %1445 = vmatpush.msra.mxu0 %v1341
    %1446 = vmatpush.msra.mxu0 %v1339
    %1447 = vmatpush.msra.mxu0 %v1337
    %1448 = vmatpush.msra.mxu0 %v1335
    %1449 = vmatpush.msra.mxu0 %v1333
    %1450 = vmatpush.msra.mxu0 %v1331
    %1451 = vmatpush.msra.mxu0 %v1329
    %1452 = vmatpush.msra.mxu0 %v1327
    %1453 = vmatpush.msra.mxu0 %v1325
    %1454 = vmatpush.msra.mxu0 %v1323
    %1455 = vmatpush.msra.mxu0 %v1321
    %1456 = vmatpush.msra.mxu0 %v1319
    %1457 = vmatmul.f32.gmra.mxu0 %v1284
    %v1458 = vpop.f32.mrf.mxu0
    %v1459 = vadd.f32 %v1439, %v1458
    %1460 = vdwg.mxu0
    %1461 = vmatpush.msra.mxu0 %v1381
    %1462 = vmatpush.msra.mxu0 %v1379
    %1463 = vmatpush.msra.mxu0 %v1377
    %1464 = vmatpush.msra.mxu0 %v1375
    %1465 = vmatpush.msra.mxu0 %v1373
    %1466 = vmatpush.msra.mxu0 %v1371
    %1467 = vmatpush.msra.mxu0 %v1369
    %1468 = vmatpush.msra.mxu0 %v1367
    %1469 = vmatpush.msra.mxu0 %v1365
    %1470 = vmatpush.msra.mxu0 %v1363
    %1471 = vmatpush.msra.mxu0 %v1361
    %1472 = vmatpush.msra.mxu0 %v1359
    %1473 = vmatpush.msra.mxu0 %v1357
    %1474 = vmatpush.msra.mxu0 %v1355
    %1475 = vmatpush.msra.mxu0 %v1353
    %1476 = vmatpush.msra.mxu0 %v1351
    %1477 = vmatmul.f32.gmra.mxu0 %v1285
    %v1478 = vpop.f32.mrf.mxu0
    %v1479 = vadd.f32 %v1459, %v1478
    %1480 = vdwg.mxu0
    %1481 = vmatpush.msra.mxu0 %v1413
    %1482 = vmatpush.msra.mxu0 %v1411
    %1483 = vmatpush.msra.mxu0 %v1409
    %1484 = vmatpush.msra.mxu0 %v1407
    %1485 = vmatpush.msra.mxu0 %v1405
    %1486 = vmatpush.msra.mxu0 %v1403
    %1487 = vmatpush.msra.mxu0 %v1401
    %1488 = vmatpush.msra.mxu0 %v1399
    %1489 = vmatpush.msra.mxu0 %v1397
    %1490 = vmatpush.msra.mxu0 %v1395
    %1491 = vmatpush.msra.mxu0 %v1393
    %1492 = vmatpush.msra.mxu0 %v1391
    %1493 = vmatpush.msra.mxu0 %v1389
    %1494 = vmatpush.msra.mxu0 %v1387
    %1495 = vmatpush.msra.mxu0 %v1385
    %1496 = vmatpush.msra.mxu0 %v1383
    %1497 = vmatmul.f32.gmra.mxu0 %v1286
    %v1498 = vpop.f32.mrf.mxu0
    %v1499 = vadd.f32 %v1479, %v1498
    %1500 = vdwg.mxu0
    %1501 = vmatpush.msra.mxu0 %v1318
    %1502 = vmatpush.msra.mxu0 %v1316
    %1503 = vmatpush.msra.mxu0 %v1314
    %1504 = vmatpush.msra.mxu0 %v1312
    %1505 = vmatpush.msra.mxu0 %v1310
    %1506 = vmatpush.msra.mxu0 %v1308
    %1507 = vmatpush.msra.mxu0 %v1306
    %1508 = vmatpush.msra.mxu0 %v1304
    %1509 = vmatpush.msra.mxu0 %v1302
    %1510 = vmatpush.msra.mxu0 %v1300
    %1511 = vmatpush.msra.mxu0 %v1298
    %1512 = vmatpush.msra.mxu0 %v1296
    %1513 = vmatpush.msra.mxu0 %v1294
    %1514 = vmatpush.msra.mxu0 %v1292
    %1515 = vmatpush.msra.mxu0 %v1290
    %1516 = vmatpush.msra.mxu0 %v1288
    %1517 = vmatmul.f32.gmra.mxu0 %v1283
    %v1518 = vpop.f32.mrf.mxu0
    %v1519 = vadd.f32 %v1418, %v1518
    %1520 = vdwg.mxu0
    %1521 = vmatpush.msra.mxu0 %v1350
    %1522 = vmatpush.msra.mxu0 %v1348
    %1523 = vmatpush.msra.mxu0 %v1346
    %1524 = vmatpush.msra.mxu0 %v1344
    %1525 = vmatpush.msra.mxu0 %v1342
    %1526 = vmatpush.msra.mxu0 %v1340
    %1527 = vmatpush.msra.mxu0 %v1338
    %1528 = vmatpush.msra.mxu0 %v1336
    %1529 = vmatpush.msra.mxu0 %v1334
    %1530 = vmatpush.msra.mxu0 %v1332
    %1531 = vmatpush.msra.mxu0 %v1330
    %1532 = vmatpush.msra.mxu0 %v1328
    %1533 = vmatpush.msra.mxu0 %v1326
    %1534 = vmatpush.msra.mxu0 %v1324
    %1535 = vmatpush.msra.mxu0 %v1322
    %1536 = vmatpush.msra.mxu0 %v1320
    %1537 = vmatmul.f32.gmra.mxu0 %v1284
    %v1538 = vpop.f32.mrf.mxu0
    %v1539 = vadd.f32 %v1519, %v1538
    %1540 = vdwg.mxu0
    %1541 = vmatpush.msra.mxu0 %v1382
    %1542 = vmatpush.msra.mxu0 %v1380
    %1543 = vmatpush.msra.mxu0 %v1378
    %1544 = vmatpush.msra.mxu0 %v1376
    %1545 = vmatpush.msra.mxu0 %v1374
    %1546 = vmatpush.msra.mxu0 %v1372
    %1547 = vmatpush.msra.mxu0 %v1370
    %1548 = vmatpush.msra.mxu0 %v1368
    %1549 = vmatpush.msra.mxu0 %v1366
    %1550 = vmatpush.msra.mxu0 %v1364
    %1551 = vmatpush.msra.mxu0 %v1362
    %1552 = vmatpush.msra.mxu0 %v1360
    %1553 = vmatpush.msra.mxu0 %v1358
    %1554 = vmatpush.msra.mxu0 %v1356
    %1555 = vmatpush.msra.mxu0 %v1354
    %1556 = vmatpush.msra.mxu0 %v1352
    %1557 = vmatmul.f32.gmra.mxu0 %v1285
    %v1558 = vpop.f32.mrf.mxu0
    %v1559 = vadd.f32 %v1539, %v1558
    %1560 = vdwg.mxu0
    %1561 = vmatpush.msra.mxu0 %v1414
    %1562 = vmatpush.msra.mxu0 %v1412
    %1563 = vmatpush.msra.mxu0 %v1410
    %1564 = vmatpush.msra.mxu0 %v1408
    %1565 = vmatpush.msra.mxu0 %v1406
    %1566 = vmatpush.msra.mxu0 %v1404
    %1567 = vmatpush.msra.mxu0 %v1402
    %1568 = vmatpush.msra.mxu0 %v1400
    %1569 = vmatpush.msra.mxu0 %v1398
    %1570 = vmatpush.msra.mxu0 %v1396
    %1571 = vmatpush.msra.mxu0 %v1394
    %1572 = vmatpush.msra.mxu0 %v1392
    %1573 = vmatpush.msra.mxu0 %v1390
    %1574 = vmatpush.msra.mxu0 %v1388
    %1575 = vmatpush.msra.mxu0 %v1386
    %1576 = vmatpush.msra.mxu0 %v1384
    %1577 = vmatmul.f32.gmra.mxu0 %v1286
    %v1578 = vpop.f32.mrf.mxu0
    %v1579 = vadd.f32 %v1559, %v1578
    %1580 = vdwg.mxu0
    %v1581 = vmax.f32 %v1499, 0.0
    %v1582 = vmax.f32 %v1579, 0.0
    %v1583 = vld [vmem:[%s5] sm:$0xff]
    %v1584 = vld [vmem:[%s5 + $0x8] sm:$0xff]
    %v1585 = vld [vmem:[%s5 + $0x10] sm:$0xff]
    %v1586 = vld [vmem:[%s5 + $0x18] sm:$0xff]
    %v1587 = vld [vmem:[%s5 + $0x20] sm:$0xff]
    %v1588 = vld [vmem:[%s5 + $0x28] sm:$0xff]
    %v1589 = vld [vmem:[%s5 + $0x30] sm:$0xff]
    %v1590 = vld [vmem:[%s5 + $0x38] sm:$0xff]
    %v1591 = vld [vmem:[%s5 + $0x40] sm:$0xff]
    %v1592 = vld [vmem:[%s5 + $0x48] sm:$0xff]
    %v1593 = vld [vmem:[%s5 + $0x50] sm:$0xff]
    %v1594 = vld [vmem:[%s5 + $0x58] sm:$0xff]
    %v1595 = vld [vmem:[%s5 + $0x60] sm:$0xff]
    %v1596 = vld [vmem:[%s5 + $0x68] sm:$0xff]
    %v1597 = vld [vmem:[%s5 + $0x70] sm:$0xff]
    %v1598 = vld [vmem:[%s5 + $0x78] sm:$0xff]
    %v1599 = vld [vmem:[%s5 + $0x80] sm:$0xff]
    %v1600 = vld [vmem:[%s5 + $0x88] sm:$0xff]
    %v1601 = vld [vmem:[%s5 + $0x90] sm:$0xff]
    %v1602 = vld [vmem:[%s5 + $0x98] sm:$0xff]
    %v1603 = vld [vmem:[%s5 + $0xa0] sm:$0xff]
    %v1604 = vld [vmem:[%s5 + $0xa8] sm:$0xff]
    %v1605 = vld [vmem:[%s5 + $0xb0] sm:$0xff]
    %v1606 = vld [vmem:[%s5 + $0xb8] sm:$0xff]
    %v1607 = vld [vmem:[%s5 + $0xc0] sm:$0xff]
    %v1608 = vld [vmem:[%s5 + $0xc8] sm:$0xff]
    %v1609 = vld [vmem:[%s5 + $0xd0] sm:$0xff]
    %v1610 = vld [vmem:[%s5 + $0xd8] sm:$0xff]
    %v1611 = vld [vmem:[%s5 + $0xe0] sm:$0xff]
    %v1612 = vld [vmem:[%s5 + $0xe8] sm:$0xff]
    %v1613 = vld [vmem:[%s5 + $0xf0] sm:$0xff]
    %v1614 = vld [vmem:[%s5 + $0xf8] sm:$0xff]
    %v1615 = vld [vmem:[#allocation9] sm:$0x1]
    %v1617 = vperm.slane %v1615, 0
    %1619 = vmatpush.msra.mxu0 %v1598
    %1620 = vmatpush.msra.mxu0 %v1597
    %1621 = vmatpush.msra.mxu0 %v1596
    %1622 = vmatpush.msra.mxu0 %v1595
    %1623 = vmatpush.msra.mxu0 %v1594
    %1624 = vmatpush.msra.mxu0 %v1593
    %1625 = vmatpush.msra.mxu0 %v1592
    %1626 = vmatpush.msra.mxu0 %v1591
    %1627 = vmatpush.msra.mxu0 %v1590
    %1628 = vmatpush.msra.mxu0 %v1589
    %1629 = vmatpush.msra.mxu0 %v1588
    %1630 = vmatpush.msra.mxu0 %v1587
    %1631 = vmatpush.msra.mxu0 %v1586
    %1632 = vmatpush.msra.mxu0 %v1585
    %1633 = vmatpush.msra.mxu0 %v1584
    %1634 = vmatpush.msra.mxu0 %v1583
    %1635 = vmatmul.f32.gmra.mxu0 %v1581
    %v1636 = vpop.f32.mrf.mxu0
    %v1637 = vadd.f32 %v1617, %v1636
    %1638 = vdwg.mxu0
    %1639 = vmatpush.msra.mxu0 %v1614
    %1640 = vmatpush.msra.mxu0 %v1613
    %1641 = vmatpush.msra.mxu0 %v1612
    %1642 = vmatpush.msra.mxu0 %v1611
    %1643 = vmatpush.msra.mxu0 %v1610
    %1644 = vmatpush.msra.mxu0 %v1609
    %1645 = vmatpush.msra.mxu0 %v1608
    %1646 = vmatpush.msra.mxu0 %v1607
    %1647 = vmatpush.msra.mxu0 %v1606
    %1648 = vmatpush.msra.mxu0 %v1605
    %1649 = vmatpush.msra.mxu0 %v1604
    %1650 = vmatpush.msra.mxu0 %v1603
    %1651 = vmatpush.msra.mxu0 %v1602
    %1652 = vmatpush.msra.mxu0 %v1601
    %1653 = vmatpush.msra.mxu0 %v1600
    %1654 = vmatpush.msra.mxu0 %v1599
    %1655 = vmatmul.f32.gmra.mxu0 %v1582
    %v1656 = vpop.f32.mrf.mxu0
    %v1657 = vadd.f32 %v1637, %v1656
    %1658 = vdwg.mxu0
    %vm1659 = vcmask 517120
    %1660 = vst.msk [vmem:[%s7] sm:$0x3] %vm1659, %v1657
    // Predicated region
    $region50: #{_encoder_forward.1} parent=1 // pred_check
      _
    $region51: #{_encoder_forward.1} parent=1 // pred_check_branch
      %1662 = sbr.rel (0) target = $region53
    $region52: #{_encoder_forward.1} parent=1 // pred_region
      _
    $region53: #{_encoder_forward.1} parent=1 // pred_fallthru
      _
    // Predicated region
    $region54: #{_encoder_forward.1} parent=1 // pred_check
      _
    $region55: #{_encoder_forward.1} parent=1 // pred_check_branch
      %1664 = sbr.rel (0) target = $region57
    $region56: #{_encoder_forward.1} parent=1 // pred_region
      _
    $region57: #{_encoder_forward.1} parent=1 // pred_fallthru
      _
    %1665 = vsyncpa [#allocation3], 1
    %1666 = vsyncpa [#allocation5], 1
    %1667 = vsyncpa [#allocation8], 1

</llo_original>
